<compile_context>
chip_gen: v6e
topology: v6e:2x2x1
jax: 0.10.0
libtpu: 0.0.40
codegen_flags: <defaults>
</compile_context>

<pallas_src>
import jax
import jax.numpy as jnp
from jax import lax
from jax.experimental import pallas as pl
from jax.experimental.pallas import tpu as pltpu


def lstm_model_kernel(xs_ref, wf0_ref, pb0_ref,
                      whh0_ref, wih1_ref, b1_ref, whh1_ref,
                      fcw_ref, fcb_ref,
                      out_ref,
                      gates_ref, hseq_ref):
    LB = xs_ref.shape[0]            # L * Bp
    Bp = out_ref.shape[0]
    H = whh0_ref.shape[0]
    L = LB // Bp

    # ---- layer-0 input-gate precompute: single fused matmul (circular conv + w_ih folded
    #      offline); positional/bias term pre-broadcast in the wrapper ----
    gates_ref[...] = (jnp.dot(xs_ref[...], wf0_ref[...],
                              preferred_element_type=jnp.float32)
                      + pb0_ref[...])                                  # (L*Bp, 4H)

    # ---- recurrence: only h @ w_hh remains inside the (fully unrolled) timestep loop ----
    def recurrent(w_hh, store_hidden):
        def step(t, carry):
            h, c = carry
            base = pl.multiple_of(t * Bp, 8)                           # aligned sublane window
            gates = gates_ref[pl.ds(base, Bp), :] + jnp.dot(
                h, w_hh, preferred_element_type=jnp.float32)           # (Bp, 4H)
            sg = jax.nn.sigmoid(gates)          # single full 128-lane EUP pass per step
            i_g = sg[:, 0:H]
            f_g = sg[:, H:2 * H]
            g_g = 2.0 * sg[:, 2 * H:3 * H] - 1.0  # tanh(z) = 2*sigmoid(2z)-1 (cols pre-scaled x2)
            o_g = sg[:, 3 * H:4 * H]
            c = f_g * c + i_g * g_g
            h = o_g * jnp.tanh(c)               # quarter-vreg (Bp, H) tanh only
            if store_hidden:
                hseq_ref[pl.ds(base, Bp), :] = h
            return (h, c)

        h0 = jnp.zeros((Bp, H), jnp.float32)
        c0 = jnp.zeros((Bp, H), jnp.float32)
        h_last, _ = lax.fori_loop(0, L, step, (h0, c0), unroll=True)
        return h_last

    recurrent(whh0_ref[...], store_hidden=True)

    # ---- layer-1 input projection: one batched matmul over the flat layer-0 outputs ----
    gates_ref[...] = (jnp.dot(hseq_ref[...], wih1_ref[...],
                              preferred_element_type=jnp.float32)
                      + b1_ref[...])

    h_last = recurrent(whh1_ref[...], store_hidden=False)

    # ---- fc + sigmoid ----
    logits = jnp.dot(h_last, fcw_ref[...],
                     preferred_element_type=jnp.float32) + fcb_ref[...]
    out_ref[...] = jax.nn.sigmoid(logits)


def forward(x, x_mark_enc, weights):
    """x: (B, L, enc_in) float32 (same convention as PyTorch batch_first)."""
    del x_mark_enc  # DataEmbedding is called with x_mark=None in the reference forward
    conv_w, pos, wih0, whh0, b0, wih1, whh1, b1, fc_w, fc_b = weights
    B, L, Cin = x.shape
    D = wih0.shape[0]
    H = whh0.shape[0]
    G = 4 * H
    NC = fc_w.shape[1]

    Bp = ((B + 7) // 8) * 8                       # pad batch to a multiple of 8 sublanes

    # -- gate-column scaling for the tanh(z) = 2*sigmoid(2z) - 1 rewrite (g-gate cols x2) --
    def scale_g(w):
        return jnp.concatenate(
            [w[..., :2 * H], 2.0 * w[..., 2 * H:3 * H], w[..., 3 * H:]], axis=-1)

    wih0_s, whh0_s, b0_s = scale_g(wih0), scale_g(whh0), scale_g(b0)
    wih1_s, whh1_s, b1_s = scale_g(wih1), scale_g(whh1), scale_g(b1)

    # -- constant-fold the embedding into the layer-0 input projection --
    convw_flat = conv_w.reshape(3 * Cin, D)       # taps stacked along the input-channel axis
    w_fused0 = convw_flat @ wih0_s                # (3*Cin, 4H): conv folded into w_ih0
    pb0 = pos @ wih0_s + b0_s                     # (L, 4H): positional + bias term
    pb0_full = jnp.repeat(pb0, Bp, axis=0)        # (L*Bp, 4H): matches flat time-major layout

    # -- circular conv taps stacked in the wrapper (rolls/concats are free in XLA) --
    x_tm = jnp.transpose(x, (1, 0, 2))            # (L, B, Cin) time-major
    if Bp != B:
        x_tm = jnp.pad(x_tm, ((0, 0), (0, Bp - B), (0, 0)))
    xp = jnp.roll(x_tm, 1, axis=0)                # x[t-1] (circular)
    xn = jnp.roll(x_tm, -1, axis=0)               # x[t+1] (circular)
    xs_flat = jnp.concatenate([xp, x_tm, xn], axis=2).reshape(L * Bp, 3 * Cin)

    # -- advisory cost estimate for the XLA scheduler --
    flops = (2 * L * Bp * (3 * Cin) * G           # layer-0 gate precompute
             + 2 * L * Bp * H * G                 # layer-1 gate precompute
             + 2 * 2 * L * Bp * H * G             # h @ w_hh, both layers
             + 2 * Bp * H * NC                    # fc
             + 10 * L * Bp * G)                   # elementwise gate math (approx)
    transcendentals = 2 * L * Bp * (G + H) + Bp * NC
    bytes_accessed = 4 * (L * Bp * 3 * Cin + 3 * Cin * G + L * Bp * G
                          + 3 * H * G + G + H * NC + NC + Bp * NC)

    vmem = pl.BlockSpec(memory_space=pltpu.MemorySpace.VMEM)
    out = pl.pallas_call(
        lstm_model_kernel,
        out_shape=jax.ShapeDtypeStruct((Bp, NC), jnp.float32),
        in_specs=[vmem] * 9,
        out_specs=vmem,
        scratch_shapes=[
            pltpu.VMEM((L * Bp, G), jnp.float32),  # flat precomputed input gates (reused/layer)
            pltpu.VMEM((L * Bp, H), jnp.float32),  # flat layer-0 hidden-state sequence
        ],
        cost_estimate=pl.CostEstimate(flops=flops,
                                      transcendentals=transcendentals,
                                      bytes_accessed=bytes_accessed),
    )(xs_flat, w_fused0, pb0_full, whh0_s, wih1_s, b1_s, whh1_s, fc_w, fc_b)
    return out[:B]                                 # drop padded batch rows


def positional_embedding(L, d_model):
    position = jnp.arange(L, dtype=jnp.float32)[:, None]
    div_term = jnp.exp(jnp.arange(0, d_model, 2, dtype=jnp.float32)
                       * (-jnp.log(10000.0) / d_model))
    pe = jnp.zeros((L, d_model), jnp.float32)
    pe = pe.at[:, 0::2].set(jnp.sin(position * div_term))
    pe = pe.at[:, 1::2].set(jnp.cos(position * div_term))
    return pe


def init_weights(key, enc_in, d_model, hidden, num_class, L):
    ks = jax.random.split(key, 8)
    k_lstm = 1.0 / jnp.sqrt(jnp.float32(hidden))
    u = lambda k, shape, s: jax.random.uniform(k, shape, jnp.float32, -s, s)

    conv_w = jax.random.normal(ks[0], (3, enc_in, d_model), jnp.float32) * 0.1
    pos = positional_embedding(L, d_model)
    wih0 = u(ks[1], (d_model, 4 * hidden), k_lstm)
    whh0 = u(ks[2], (hidden, 4 * hidden), k_lstm)
    b0 = u(ks[3], (1, 4 * hidden), k_lstm)
    wih1 = u(ks[4], (hidden, 4 * hidden), k_lstm)
    whh1 = u(ks[5], (hidden, 4 * hidden), k_lstm)
    b1 = u(ks[6], (1, 4 * hidden), k_lstm)
    k_fc = 1.0 / jnp.sqrt(jnp.float32(hidden))
    fc_w = u(ks[7], (hidden, num_class), k_fc)
    fc_b = jnp.zeros((1, num_class), jnp.float32)
    return (conv_w, pos, wih0, whh0, b0, wih1, whh1, b1, fc_w, fc_b)


def reference_forward(x, weights):
    """Pure-JAX reference of the same forward pass (for verification, unscaled weights)."""
    conv_w, pos, wih0, whh0, b0, wih1, whh1, b1, fc_w, fc_b = weights
    xp = jnp.roll(x, 1, axis=1)
    xn = jnp.roll(x, -1, axis=1)
    emb = xp @ conv_w[0] + x @ conv_w[1] + xn @ conv_w[2] + pos[None]

    def lstm_layer(seq, w_ih, w_hh, b):
        H = w_hh.shape[0]

        def step(carry, x_t):
            h, c = carry
            gates = x_t @ w_ih + h @ w_hh + b
            i, f, g, o = jnp.split(gates, 4, axis=-1)
            i, f, o = jax.nn.sigmoid(i), jax.nn.sigmoid(f), jax.nn.sigmoid(o)
            g = jnp.tanh(g)
            c = f * c + i * g
            h = o * jnp.tanh(c)
            return (h, c), h

        init = (jnp.zeros((seq.shape[0], H), jnp.float32),
                jnp.zeros((seq.shape[0], H), jnp.float32))
        _, hs = lax.scan(step, init, jnp.transpose(seq, (1, 0, 2)))
        return jnp.transpose(hs, (1, 0, 2))

    s1 = lstm_layer(emb, wih0, whh0, b0)
    s2 = lstm_layer(s1, wih1, whh1, b1)
    return jax.nn.sigmoid(s2[:, -1, :] @ fc_w + fc_b)


if __name__ == "__main__":
    params = dict(hidden_size=32, num_layers=2, feature_size=4, num_class=4,
                  enc_in=4, d_model=32, embed='fixed', freq='h', dropout=0.1)
    B, L = 2, 8

    key = jax.random.PRNGKey(0)
    kw, kx, km = jax.random.split(key, 3)

    weights = init_weights(kw, params['enc_in'], params['d_model'],
                           params['hidden_size'], params['num_class'], L)

    x = jax.random.normal(kx, (B, L, params['enc_in']), jnp.float32)
    x_mark_enc = jax.random.normal(km, (B, L, 4), jnp.float32)  # unused by the forward pass

    out = forward(x, x_mark_enc, weights)
    out = jax.block_until_ready(out)

    ref = reference_forward(x, weights)
    assert out.shape == (B, params['num_class'])
    # slightly looser than before to cover the tanh=2*sigmoid(2x)-1 rewrite + offline weight fusion
    assert jnp.allclose(out, ref, atol=1e-4, rtol=1e-3), (out, ref)

    print("KERNEL_OK")
</pallas_src>

<mosaic_0001>
module attributes {stable_mosaic.version = 11 : i64} {
  func.func @lstm_model_kernel(%arg0: memref<64x12xf32, #tpu.memory_space<vmem>>, %arg1: memref<12x128xf32, #tpu.memory_space<vmem>>, %arg2: memref<64x128xf32, #tpu.memory_space<vmem>>, %arg3: memref<32x128xf32, #tpu.memory_space<vmem>>, %arg4: memref<32x128xf32, #tpu.memory_space<vmem>>, %arg5: memref<1x128xf32, #tpu.memory_space<vmem>>, %arg6: memref<32x128xf32, #tpu.memory_space<vmem>>, %arg7: memref<32x4xf32, #tpu.memory_space<vmem>>, %arg8: memref<1x4xf32, #tpu.memory_space<vmem>>, %arg9: memref<8x4xf32, #tpu.memory_space<vmem>>, %arg10: memref<64x128xf32, #tpu.memory_space<vmem>>, %arg11: memref<64x32xf32, #tpu.memory_space<vmem>>) attributes {dimension_semantics = [], scalar_prefetch = 0 : i64, scratch_operands = 2 : i64, tpu.core_type = #tpu.core_type<tc>} {
    %c0 = arith.constant 0 : index
    %c0_0 = arith.constant 0 : index
    %0 = vector.load %arg0[%c0, %c0_0] : memref<64x12xf32, #tpu.memory_space<vmem>>, vector<64x12xf32>
    %c0_1 = arith.constant 0 : index
    %c0_2 = arith.constant 0 : index
    %1 = vector.load %arg1[%c0_1, %c0_2] : memref<12x128xf32, #tpu.memory_space<vmem>>, vector<12x128xf32>
    %cst = arith.constant dense<0.000000e+00> : vector<64x128xf32>
    %2 = tpu.matmul %0, %1, %cst {dimension_numbers = #tpu.dot_dimension_numbers<[1], [0], [0], [1], [0, 0, 1, 1], [], []>} : vector<64x12xf32>, vector<12x128xf32>, vector<64x128xf32> -> vector<64x128xf32>
    %c0_3 = arith.constant 0 : index
    %c0_4 = arith.constant 0 : index
    %3 = vector.load %arg2[%c0_3, %c0_4] : memref<64x128xf32, #tpu.memory_space<vmem>>, vector<64x128xf32>
    %4 = arith.addf %2, %3 : vector<64x128xf32>
    %c0_5 = arith.constant 0 : index
    %c0_6 = arith.constant 0 : index
    %5 = vector.load %arg10[%c0_5, %c0_6] : memref<64x128xf32, #tpu.memory_space<vmem>>, vector<64x128xf32>
    tpu.vector_store %arg10[%c0_5, %c0_6], %4 {strides = array<i32>} : memref<64x128xf32, #tpu.memory_space<vmem>>, vector<64x128xf32>,
    %c0_7 = arith.constant 0 : index
    %c0_8 = arith.constant 0 : index
    %6 = vector.load %arg3[%c0_7, %c0_8] : memref<32x128xf32, #tpu.memory_space<vmem>>, vector<32x128xf32>
    %cst_9 = arith.constant 0.000000e+00 : f32
    %7 = vector.broadcast %cst_9 : f32 to vector<8x32xf32>
    %cst_10 = arith.constant 0.000000e+00 : f32
    %8 = vector.broadcast %cst_10 : f32 to vector<8x32xf32>
    %c0_i32 = arith.constant 0 : i32
    %c8_i32 = arith.constant 8 : i32
    %9 = arith.muli %c0_i32, %c8_i32 : i32
    %10 = tpu.assume_multiple %9, 8 : i32
    %11 = arith.index_cast %10 : i32 to index
    %c0_11 = arith.constant 0 : index
    %12 = vector.load %arg10[%11, %c0_11] : memref<64x128xf32, #tpu.memory_space<vmem>>, vector<8x128xf32>
    %cst_12 = arith.constant dense<0.000000e+00> : vector<8x128xf32>
    %13 = tpu.matmul %7, %6, %cst_12 {dimension_numbers = #tpu.dot_dimension_numbers<[1], [0], [0], [1], [0, 0, 1, 1], [], []>} : vector<8x32xf32>, vector<32x128xf32>, vector<8x128xf32> -> vector<8x128xf32>
    %14 = arith.addf %12, %13 : vector<8x128xf32>
    %15 = arith.negf %14 : vector<8x128xf32>
    %16 = math.exp %15 : vector<8x128xf32>
    %cst_13 = arith.constant 1.000000e+00 : f32
    %17 = vector.broadcast %cst_13 : f32 to vector<8x128xf32>
    %18 = arith.addf %17, %16 : vector<8x128xf32>
    %19 = arith.divf %17, %18 : vector<8x128xf32>
    %20 = vector.extract_strided_slice %19 {offsets = [0, 0], sizes = [8, 32], strides = [1, 1]} : vector<8x128xf32> to vector<8x32xf32>
    %21 = vector.extract_strided_slice %19 {offsets = [0, 32], sizes = [8, 32], strides = [1, 1]} : vector<8x128xf32> to vector<8x32xf32>
    %22 = vector.extract_strided_slice %19 {offsets = [0, 64], sizes = [8, 32], strides = [1, 1]} : vector<8x128xf32> to vector<8x32xf32>
    %cst_14 = arith.constant 2.000000e+00 : f32
    %23 = vector.broadcast %cst_14 : f32 to vector<8x32xf32>
    %24 = arith.mulf %23, %22 : vector<8x32xf32>
    %cst_15 = arith.constant 1.000000e+00 : f32
    %25 = vector.broadcast %cst_15 : f32 to vector<8x32xf32>
    %26 = arith.subf %24, %25 : vector<8x32xf32>
    %27 = vector.extract_strided_slice %19 {offsets = [0, 96], sizes = [8, 32], strides = [1, 1]} : vector<8x128xf32> to vector<8x32xf32>
    %28 = arith.mulf %21, %8 : vector<8x32xf32>
    %29 = arith.mulf %20, %26 : vector<8x32xf32>
    %30 = arith.addf %28, %29 : vector<8x32xf32>
    %31 = math.tanh %30 : vector<8x32xf32>
    %32 = arith.mulf %27, %31 : vector<8x32xf32>
    %33 = arith.index_cast %10 : i32 to index
    %c0_16 = arith.constant 0 : index
    %34 = vector.load %arg11[%33, %c0_16] : memref<64x32xf32, #tpu.memory_space<vmem>>, vector<8x32xf32>
    tpu.vector_store %arg11[%33, %c0_16], %32 {strides = array<i32>} : memref<64x32xf32, #tpu.memory_space<vmem>>, vector<8x32xf32>,
    %c1_i32 = arith.constant 1 : i32
    %c8_i32_17 = arith.constant 8 : i32
    %35 = arith.muli %c1_i32, %c8_i32_17 : i32
    %36 = tpu.assume_multiple %35, 8 : i32
    %37 = arith.index_cast %36 : i32 to index
    %c0_18 = arith.constant 0 : index
    %38 = vector.load %arg10[%37, %c0_18] : memref<64x128xf32, #tpu.memory_space<vmem>>, vector<8x128xf32>
    %cst_19 = arith.constant dense<0.000000e+00> : vector<8x128xf32>
    %39 = tpu.matmul %32, %6, %cst_19 {dimension_numbers = #tpu.dot_dimension_numbers<[1], [0], [0], [1], [0, 0, 1, 1], [], []>} : vector<8x32xf32>, vector<32x128xf32>, vector<8x128xf32> -> vector<8x128xf32>
    %40 = arith.addf %38, %39 : vector<8x128xf32>
    %41 = arith.negf %40 : vector<8x128xf32>
    %42 = math.exp %41 : vector<8x128xf32>
    %cst_20 = arith.constant 1.000000e+00 : f32
    %43 = vector.broadcast %cst_20 : f32 to vector<8x128xf32>
    %44 = arith.addf %43, %42 : vector<8x128xf32>
    %45 = arith.divf %43, %44 : vector<8x128xf32>
    %46 = vector.extract_strided_slice %45 {offsets = [0, 0], sizes = [8, 32], strides = [1, 1]} : vector<8x128xf32> to vector<8x32xf32>
    %47 = vector.extract_strided_slice %45 {offsets = [0, 32], sizes = [8, 32], strides = [1, 1]} : vector<8x128xf32> to vector<8x32xf32>
    %48 = vector.extract_strided_slice %45 {offsets = [0, 64], sizes = [8, 32], strides = [1, 1]} : vector<8x128xf32> to vector<8x32xf32>
    %cst_21 = arith.constant 2.000000e+00 : f32
    %49 = vector.broadcast %cst_21 : f32 to vector<8x32xf32>
    %50 = arith.mulf %49, %48 : vector<8x32xf32>
    %cst_22 = arith.constant 1.000000e+00 : f32
    %51 = vector.broadcast %cst_22 : f32 to vector<8x32xf32>
    %52 = arith.subf %50, %51 : vector<8x32xf32>
    %53 = vector.extract_strided_slice %45 {offsets = [0, 96], sizes = [8, 32], strides = [1, 1]} : vector<8x128xf32> to vector<8x32xf32>
    %54 = arith.mulf %47, %30 : vector<8x32xf32>
    %55 = arith.mulf %46, %52 : vector<8x32xf32>
    %56 = arith.addf %54, %55 : vector<8x32xf32>
    %57 = math.tanh %56 : vector<8x32xf32>
    %58 = arith.mulf %53, %57 : vector<8x32xf32>
    %59 = arith.index_cast %36 : i32 to index
    %c0_23 = arith.constant 0 : index
    %60 = vector.load %arg11[%59, %c0_23] : memref<64x32xf32, #tpu.memory_space<vmem>>, vector<8x32xf32>
    tpu.vector_store %arg11[%59, %c0_23], %58 {strides = array<i32>} : memref<64x32xf32, #tpu.memory_space<vmem>>, vector<8x32xf32>,
    %c2_i32 = arith.constant 2 : i32
    %c8_i32_24 = arith.constant 8 : i32
    %61 = arith.muli %c2_i32, %c8_i32_24 : i32
    %62 = tpu.assume_multiple %61, 8 : i32
    %63 = arith.index_cast %62 : i32 to index
    %c0_25 = arith.constant 0 : index
    %64 = vector.load %arg10[%63, %c0_25] : memref<64x128xf32, #tpu.memory_space<vmem>>, vector<8x128xf32>
    %cst_26 = arith.constant dense<0.000000e+00> : vector<8x128xf32>
    %65 = tpu.matmul %58, %6, %cst_26 {dimension_numbers = #tpu.dot_dimension_numbers<[1], [0], [0], [1], [0, 0, 1, 1], [], []>} : vector<8x32xf32>, vector<32x128xf32>, vector<8x128xf32> -> vector<8x128xf32>
    %66 = arith.addf %64, %65 : vector<8x128xf32>
    %67 = arith.negf %66 : vector<8x128xf32>
    %68 = math.exp %67 : vector<8x128xf32>
    %cst_27 = arith.constant 1.000000e+00 : f32
    %69 = vector.broadcast %cst_27 : f32 to vector<8x128xf32>
    %70 = arith.addf %69, %68 : vector<8x128xf32>
    %71 = arith.divf %69, %70 : vector<8x128xf32>
    %72 = vector.extract_strided_slice %71 {offsets = [0, 0], sizes = [8, 32], strides = [1, 1]} : vector<8x128xf32> to vector<8x32xf32>
    %73 = vector.extract_strided_slice %71 {offsets = [0, 32], sizes = [8, 32], strides = [1, 1]} : vector<8x128xf32> to vector<8x32xf32>
    %74 = vector.extract_strided_slice %71 {offsets = [0, 64], sizes = [8, 32], strides = [1, 1]} : vector<8x128xf32> to vector<8x32xf32>
    %cst_28 = arith.constant 2.000000e+00 : f32
    %75 = vector.broadcast %cst_28 : f32 to vector<8x32xf32>
    %76 = arith.mulf %75, %74 : vector<8x32xf32>
    %cst_29 = arith.constant 1.000000e+00 : f32
    %77 = vector.broadcast %cst_29 : f32 to vector<8x32xf32>
    %78 = arith.subf %76, %77 : vector<8x32xf32>
    %79 = vector.extract_strided_slice %71 {offsets = [0, 96], sizes = [8, 32], strides = [1, 1]} : vector<8x128xf32> to vector<8x32xf32>
    %80 = arith.mulf %73, %56 : vector<8x32xf32>
    %81 = arith.mulf %72, %78 : vector<8x32xf32>
    %82 = arith.addf %80, %81 : vector<8x32xf32>
    %83 = math.tanh %82 : vector<8x32xf32>
    %84 = arith.mulf %79, %83 : vector<8x32xf32>
    %85 = arith.index_cast %62 : i32 to index
    %c0_30 = arith.constant 0 : index
    %86 = vector.load %arg11[%85, %c0_30] : memref<64x32xf32, #tpu.memory_space<vmem>>, vector<8x32xf32>
    tpu.vector_store %arg11[%85, %c0_30], %84 {strides = array<i32>} : memref<64x32xf32, #tpu.memory_space<vmem>>, vector<8x32xf32>,
    %c3_i32 = arith.constant 3 : i32
    %c8_i32_31 = arith.constant 8 : i32
    %87 = arith.muli %c3_i32, %c8_i32_31 : i32
    %88 = tpu.assume_multiple %87, 8 : i32
    %89 = arith.index_cast %88 : i32 to index
    %c0_32 = arith.constant 0 : index
    %90 = vector.load %arg10[%89, %c0_32] : memref<64x128xf32, #tpu.memory_space<vmem>>, vector<8x128xf32>
    %cst_33 = arith.constant dense<0.000000e+00> : vector<8x128xf32>
    %91 = tpu.matmul %84, %6, %cst_33 {dimension_numbers = #tpu.dot_dimension_numbers<[1], [0], [0], [1], [0, 0, 1, 1], [], []>} : vector<8x32xf32>, vector<32x128xf32>, vector<8x128xf32> -> vector<8x128xf32>
    %92 = arith.addf %90, %91 : vector<8x128xf32>
    %93 = arith.negf %92 : vector<8x128xf32>
    %94 = math.exp %93 : vector<8x128xf32>
    %cst_34 = arith.constant 1.000000e+00 : f32
    %95 = vector.broadcast %cst_34 : f32 to vector<8x128xf32>
    %96 = arith.addf %95, %94 : vector<8x128xf32>
    %97 = arith.divf %95, %96 : vector<8x128xf32>
    %98 = vector.extract_strided_slice %97 {offsets = [0, 0], sizes = [8, 32], strides = [1, 1]} : vector<8x128xf32> to vector<8x32xf32>
    %99 = vector.extract_strided_slice %97 {offsets = [0, 32], sizes = [8, 32], strides = [1, 1]} : vector<8x128xf32> to vector<8x32xf32>
    %100 = vector.extract_strided_slice %97 {offsets = [0, 64], sizes = [8, 32], strides = [1, 1]} : vector<8x128xf32> to vector<8x32xf32>
    %cst_35 = arith.constant 2.000000e+00 : f32
    %101 = vector.broadcast %cst_35 : f32 to vector<8x32xf32>
    %102 = arith.mulf %101, %100 : vector<8x32xf32>
    %cst_36 = arith.constant 1.000000e+00 : f32
    %103 = vector.broadcast %cst_36 : f32 to vector<8x32xf32>
    %104 = arith.subf %102, %103 : vector<8x32xf32>
    %105 = vector.extract_strided_slice %97 {offsets = [0, 96], sizes = [8, 32], strides = [1, 1]} : vector<8x128xf32> to vector<8x32xf32>
    %106 = arith.mulf %99, %82 : vector<8x32xf32>
    %107 = arith.mulf %98, %104 : vector<8x32xf32>
    %108 = arith.addf %106, %107 : vector<8x32xf32>
    %109 = math.tanh %108 : vector<8x32xf32>
    %110 = arith.mulf %105, %109 : vector<8x32xf32>
    %111 = arith.index_cast %88 : i32 to index
    %c0_37 = arith.constant 0 : index
    %112 = vector.load %arg11[%111, %c0_37] : memref<64x32xf32, #tpu.memory_space<vmem>>, vector<8x32xf32>
    tpu.vector_store %arg11[%111, %c0_37], %110 {strides = array<i32>} : memref<64x32xf32, #tpu.memory_space<vmem>>, vector<8x32xf32>,
    %c4_i32 = arith.constant 4 : i32
    %c8_i32_38 = arith.constant 8 : i32
    %113 = arith.muli %c4_i32, %c8_i32_38 : i32
    %114 = tpu.assume_multiple %113, 8 : i32
    %115 = arith.index_cast %114 : i32 to index
    %c0_39 = arith.constant 0 : index
    %116 = vector.load %arg10[%115, %c0_39] : memref<64x128xf32, #tpu.memory_space<vmem>>, vector<8x128xf32>
    %cst_40 = arith.constant dense<0.000000e+00> : vector<8x128xf32>
    %117 = tpu.matmul %110, %6, %cst_40 {dimension_numbers = #tpu.dot_dimension_numbers<[1], [0], [0], [1], [0, 0, 1, 1], [], []>} : vector<8x32xf32>, vector<32x128xf32>, vector<8x128xf32> -> vector<8x128xf32>
    %118 = arith.addf %116, %117 : vector<8x128xf32>
    %119 = arith.negf %118 : vector<8x128xf32>
    %120 = math.exp %119 : vector<8x128xf32>
    %cst_41 = arith.constant 1.000000e+00 : f32
    %121 = vector.broadcast %cst_41 : f32 to vector<8x128xf32>
    %122 = arith.addf %121, %120 : vector<8x128xf32>
    %123 = arith.divf %121, %122 : vector<8x128xf32>
    %124 = vector.extract_strided_slice %123 {offsets = [0, 0], sizes = [8, 32], strides = [1, 1]} : vector<8x128xf32> to vector<8x32xf32>
    %125 = vector.extract_strided_slice %123 {offsets = [0, 32], sizes = [8, 32], strides = [1, 1]} : vector<8x128xf32> to vector<8x32xf32>
    %126 = vector.extract_strided_slice %123 {offsets = [0, 64], sizes = [8, 32], strides = [1, 1]} : vector<8x128xf32> to vector<8x32xf32>
    %cst_42 = arith.constant 2.000000e+00 : f32
    %127 = vector.broadcast %cst_42 : f32 to vector<8x32xf32>
    %128 = arith.mulf %127, %126 : vector<8x32xf32>
    %cst_43 = arith.constant 1.000000e+00 : f32
    %129 = vector.broadcast %cst_43 : f32 to vector<8x32xf32>
    %130 = arith.subf %128, %129 : vector<8x32xf32>
    %131 = vector.extract_strided_slice %123 {offsets = [0, 96], sizes = [8, 32], strides = [1, 1]} : vector<8x128xf32> to vector<8x32xf32>
    %132 = arith.mulf %125, %108 : vector<8x32xf32>
    %133 = arith.mulf %124, %130 : vector<8x32xf32>
    %134 = arith.addf %132, %133 : vector<8x32xf32>
    %135 = math.tanh %134 : vector<8x32xf32>
    %136 = arith.mulf %131, %135 : vector<8x32xf32>
    %137 = arith.index_cast %114 : i32 to index
    %c0_44 = arith.constant 0 : index
    %138 = vector.load %arg11[%137, %c0_44] : memref<64x32xf32, #tpu.memory_space<vmem>>, vector<8x32xf32>
    tpu.vector_store %arg11[%137, %c0_44], %136 {strides = array<i32>} : memref<64x32xf32, #tpu.memory_space<vmem>>, vector<8x32xf32>,
    %c5_i32 = arith.constant 5 : i32
    %c8_i32_45 = arith.constant 8 : i32
    %139 = arith.muli %c5_i32, %c8_i32_45 : i32
    %140 = tpu.assume_multiple %139, 8 : i32
    %141 = arith.index_cast %140 : i32 to index
    %c0_46 = arith.constant 0 : index
    %142 = vector.load %arg10[%141, %c0_46] : memref<64x128xf32, #tpu.memory_space<vmem>>, vector<8x128xf32>
    %cst_47 = arith.constant dense<0.000000e+00> : vector<8x128xf32>
    %143 = tpu.matmul %136, %6, %cst_47 {dimension_numbers = #tpu.dot_dimension_numbers<[1], [0], [0], [1], [0, 0, 1, 1], [], []>} : vector<8x32xf32>, vector<32x128xf32>, vector<8x128xf32> -> vector<8x128xf32>
    %144 = arith.addf %142, %143 : vector<8x128xf32>
    %145 = arith.negf %144 : vector<8x128xf32>
    %146 = math.exp %145 : vector<8x128xf32>
    %cst_48 = arith.constant 1.000000e+00 : f32
    %147 = vector.broadcast %cst_48 : f32 to vector<8x128xf32>
    %148 = arith.addf %147, %146 : vector<8x128xf32>
    %149 = arith.divf %147, %148 : vector<8x128xf32>
    %150 = vector.extract_strided_slice %149 {offsets = [0, 0], sizes = [8, 32], strides = [1, 1]} : vector<8x128xf32> to vector<8x32xf32>
    %151 = vector.extract_strided_slice %149 {offsets = [0, 32], sizes = [8, 32], strides = [1, 1]} : vector<8x128xf32> to vector<8x32xf32>
    %152 = vector.extract_strided_slice %149 {offsets = [0, 64], sizes = [8, 32], strides = [1, 1]} : vector<8x128xf32> to vector<8x32xf32>
    %cst_49 = arith.constant 2.000000e+00 : f32
    %153 = vector.broadcast %cst_49 : f32 to vector<8x32xf32>
    %154 = arith.mulf %153, %152 : vector<8x32xf32>
    %cst_50 = arith.constant 1.000000e+00 : f32
    %155 = vector.broadcast %cst_50 : f32 to vector<8x32xf32>
    %156 = arith.subf %154, %155 : vector<8x32xf32>
    %157 = vector.extract_strided_slice %149 {offsets = [0, 96], sizes = [8, 32], strides = [1, 1]} : vector<8x128xf32> to vector<8x32xf32>
    %158 = arith.mulf %151, %134 : vector<8x32xf32>
    %159 = arith.mulf %150, %156 : vector<8x32xf32>
    %160 = arith.addf %158, %159 : vector<8x32xf32>
    %161 = math.tanh %160 : vector<8x32xf32>
    %162 = arith.mulf %157, %161 : vector<8x32xf32>
    %163 = arith.index_cast %140 : i32 to index
    %c0_51 = arith.constant 0 : index
    %164 = vector.load %arg11[%163, %c0_51] : memref<64x32xf32, #tpu.memory_space<vmem>>, vector<8x32xf32>
    tpu.vector_store %arg11[%163, %c0_51], %162 {strides = array<i32>} : memref<64x32xf32, #tpu.memory_space<vmem>>, vector<8x32xf32>,
    %c6_i32 = arith.constant 6 : i32
    %c8_i32_52 = arith.constant 8 : i32
    %165 = arith.muli %c6_i32, %c8_i32_52 : i32
    %166 = tpu.assume_multiple %165, 8 : i32
    %167 = arith.index_cast %166 : i32 to index
    %c0_53 = arith.constant 0 : index
    %168 = vector.load %arg10[%167, %c0_53] : memref<64x128xf32, #tpu.memory_space<vmem>>, vector<8x128xf32>
    %cst_54 = arith.constant dense<0.000000e+00> : vector<8x128xf32>
    %169 = tpu.matmul %162, %6, %cst_54 {dimension_numbers = #tpu.dot_dimension_numbers<[1], [0], [0], [1], [0, 0, 1, 1], [], []>} : vector<8x32xf32>, vector<32x128xf32>, vector<8x128xf32> -> vector<8x128xf32>
    %170 = arith.addf %168, %169 : vector<8x128xf32>
    %171 = arith.negf %170 : vector<8x128xf32>
    %172 = math.exp %171 : vector<8x128xf32>
    %cst_55 = arith.constant 1.000000e+00 : f32
    %173 = vector.broadcast %cst_55 : f32 to vector<8x128xf32>
    %174 = arith.addf %173, %172 : vector<8x128xf32>
    %175 = arith.divf %173, %174 : vector<8x128xf32>
    %176 = vector.extract_strided_slice %175 {offsets = [0, 0], sizes = [8, 32], strides = [1, 1]} : vector<8x128xf32> to vector<8x32xf32>
    %177 = vector.extract_strided_slice %175 {offsets = [0, 32], sizes = [8, 32], strides = [1, 1]} : vector<8x128xf32> to vector<8x32xf32>
    %178 = vector.extract_strided_slice %175 {offsets = [0, 64], sizes = [8, 32], strides = [1, 1]} : vector<8x128xf32> to vector<8x32xf32>
    %cst_56 = arith.constant 2.000000e+00 : f32
    %179 = vector.broadcast %cst_56 : f32 to vector<8x32xf32>
    %180 = arith.mulf %179, %178 : vector<8x32xf32>
    %cst_57 = arith.constant 1.000000e+00 : f32
    %181 = vector.broadcast %cst_57 : f32 to vector<8x32xf32>
    %182 = arith.subf %180, %181 : vector<8x32xf32>
    %183 = vector.extract_strided_slice %175 {offsets = [0, 96], sizes = [8, 32], strides = [1, 1]} : vector<8x128xf32> to vector<8x32xf32>
    %184 = arith.mulf %177, %160 : vector<8x32xf32>
    %185 = arith.mulf %176, %182 : vector<8x32xf32>
    %186 = arith.addf %184, %185 : vector<8x32xf32>
    %187 = math.tanh %186 : vector<8x32xf32>
    %188 = arith.mulf %183, %187 : vector<8x32xf32>
    %189 = arith.index_cast %166 : i32 to index
    %c0_58 = arith.constant 0 : index
    %190 = vector.load %arg11[%189, %c0_58] : memref<64x32xf32, #tpu.memory_space<vmem>>, vector<8x32xf32>
    tpu.vector_store %arg11[%189, %c0_58], %188 {strides = array<i32>} : memref<64x32xf32, #tpu.memory_space<vmem>>, vector<8x32xf32>,
    %c7_i32 = arith.constant 7 : i32
    %c8_i32_59 = arith.constant 8 : i32
    %191 = arith.muli %c7_i32, %c8_i32_59 : i32
    %192 = tpu.assume_multiple %191, 8 : i32
    %193 = arith.index_cast %192 : i32 to index
    %c0_60 = arith.constant 0 : index
    %194 = vector.load %arg10[%193, %c0_60] : memref<64x128xf32, #tpu.memory_space<vmem>>, vector<8x128xf32>
    %cst_61 = arith.constant dense<0.000000e+00> : vector<8x128xf32>
    %195 = tpu.matmul %188, %6, %cst_61 {dimension_numbers = #tpu.dot_dimension_numbers<[1], [0], [0], [1], [0, 0, 1, 1], [], []>} : vector<8x32xf32>, vector<32x128xf32>, vector<8x128xf32> -> vector<8x128xf32>
    %196 = arith.addf %194, %195 : vector<8x128xf32>
    %197 = arith.negf %196 : vector<8x128xf32>
    %198 = math.exp %197 : vector<8x128xf32>
    %cst_62 = arith.constant 1.000000e+00 : f32
    %199 = vector.broadcast %cst_62 : f32 to vector<8x128xf32>
    %200 = arith.addf %199, %198 : vector<8x128xf32>
    %201 = arith.divf %199, %200 : vector<8x128xf32>
    %202 = vector.extract_strided_slice %201 {offsets = [0, 0], sizes = [8, 32], strides = [1, 1]} : vector<8x128xf32> to vector<8x32xf32>
    %203 = vector.extract_strided_slice %201 {offsets = [0, 32], sizes = [8, 32], strides = [1, 1]} : vector<8x128xf32> to vector<8x32xf32>
    %204 = vector.extract_strided_slice %201 {offsets = [0, 64], sizes = [8, 32], strides = [1, 1]} : vector<8x128xf32> to vector<8x32xf32>
    %cst_63 = arith.constant 2.000000e+00 : f32
    %205 = vector.broadcast %cst_63 : f32 to vector<8x32xf32>
    %206 = arith.mulf %205, %204 : vector<8x32xf32>
    %cst_64 = arith.constant 1.000000e+00 : f32
    %207 = vector.broadcast %cst_64 : f32 to vector<8x32xf32>
    %208 = arith.subf %206, %207 : vector<8x32xf32>
    %209 = vector.extract_strided_slice %201 {offsets = [0, 96], sizes = [8, 32], strides = [1, 1]} : vector<8x128xf32> to vector<8x32xf32>
    %210 = arith.mulf %203, %186 : vector<8x32xf32>
    %211 = arith.mulf %202, %208 : vector<8x32xf32>
    %212 = arith.addf %210, %211 : vector<8x32xf32>
    %213 = math.tanh %212 : vector<8x32xf32>
    %214 = arith.mulf %209, %213 : vector<8x32xf32>
    %215 = arith.index_cast %192 : i32 to index
    %c0_65 = arith.constant 0 : index
    %216 = vector.load %arg11[%215, %c0_65] : memref<64x32xf32, #tpu.memory_space<vmem>>, vector<8x32xf32>
    tpu.vector_store %arg11[%215, %c0_65], %214 {strides = array<i32>} : memref<64x32xf32, #tpu.memory_space<vmem>>, vector<8x32xf32>,
    %c8_i32_66 = arith.constant 8 : i32
    %c0_67 = arith.constant 0 : index
    %c0_68 = arith.constant 0 : index
    %217 = vector.load %arg11[%c0_67, %c0_68] : memref<64x32xf32, #tpu.memory_space<vmem>>, vector<64x32xf32>
    %c0_69 = arith.constant 0 : index
    %c0_70 = arith.constant 0 : index
    %218 = vector.load %arg4[%c0_69, %c0_70] : memref<32x128xf32, #tpu.memory_space<vmem>>, vector<32x128xf32>
    %cst_71 = arith.constant dense<0.000000e+00> : vector<64x128xf32>
    %219 = tpu.matmul %217, %218, %cst_71 {dimension_numbers = #tpu.dot_dimension_numbers<[1], [0], [0], [1], [0, 0, 1, 1], [], []>} : vector<64x32xf32>, vector<32x128xf32>, vector<64x128xf32> -> vector<64x128xf32>
    %c0_72 = arith.constant 0 : index
    %c0_73 = arith.constant 0 : index
    %220 = vector.load %arg5[%c0_72, %c0_73] : memref<1x128xf32, #tpu.memory_space<vmem>>, vector<1x128xf32>
    %221 = vector.broadcast %220 : vector<1x128xf32> to vector<64x128xf32>
    %222 = arith.addf %219, %221 : vector<64x128xf32>
    %c0_74 = arith.constant 0 : index
    %c0_75 = arith.constant 0 : index
    %223 = vector.load %arg10[%c0_74, %c0_75] : memref<64x128xf32, #tpu.memory_space<vmem>>, vector<64x128xf32>
    tpu.vector_store %arg10[%c0_74, %c0_75], %222 {strides = array<i32>} : memref<64x128xf32, #tpu.memory_space<vmem>>, vector<64x128xf32>,
    %c0_76 = arith.constant 0 : index
    %c0_77 = arith.constant 0 : index
    %224 = vector.load %arg6[%c0_76, %c0_77] : memref<32x128xf32, #tpu.memory_space<vmem>>, vector<32x128xf32>
    %cst_78 = arith.constant 0.000000e+00 : f32
    %225 = vector.broadcast %cst_78 : f32 to vector<8x32xf32>
    %cst_79 = arith.constant 0.000000e+00 : f32
    %226 = vector.broadcast %cst_79 : f32 to vector<8x32xf32>
    %c0_i32_80 = arith.constant 0 : i32
    %c8_i32_81 = arith.constant 8 : i32
    %227 = arith.muli %c0_i32_80, %c8_i32_81 : i32
    %228 = tpu.assume_multiple %227, 8 : i32
    %229 = arith.index_cast %228 : i32 to index
    %c0_82 = arith.constant 0 : index
    %230 = vector.load %arg10[%229, %c0_82] : memref<64x128xf32, #tpu.memory_space<vmem>>, vector<8x128xf32>
    %cst_83 = arith.constant dense<0.000000e+00> : vector<8x128xf32>
    %231 = tpu.matmul %225, %224, %cst_83 {dimension_numbers = #tpu.dot_dimension_numbers<[1], [0], [0], [1], [0, 0, 1, 1], [], []>} : vector<8x32xf32>, vector<32x128xf32>, vector<8x128xf32> -> vector<8x128xf32>
    %232 = arith.addf %230, %231 : vector<8x128xf32>
    %233 = arith.negf %232 : vector<8x128xf32>
    %234 = math.exp %233 : vector<8x128xf32>
    %cst_84 = arith.constant 1.000000e+00 : f32
    %235 = vector.broadcast %cst_84 : f32 to vector<8x128xf32>
    %236 = arith.addf %235, %234 : vector<8x128xf32>
    %237 = arith.divf %235, %236 : vector<8x128xf32>
    %238 = vector.extract_strided_slice %237 {offsets = [0, 0], sizes = [8, 32], strides = [1, 1]} : vector<8x128xf32> to vector<8x32xf32>
    %239 = vector.extract_strided_slice %237 {offsets = [0, 32], sizes = [8, 32], strides = [1, 1]} : vector<8x128xf32> to vector<8x32xf32>
    %240 = vector.extract_strided_slice %237 {offsets = [0, 64], sizes = [8, 32], strides = [1, 1]} : vector<8x128xf32> to vector<8x32xf32>
    %cst_85 = arith.constant 2.000000e+00 : f32
    %241 = vector.broadcast %cst_85 : f32 to vector<8x32xf32>
    %242 = arith.mulf %241, %240 : vector<8x32xf32>
    %cst_86 = arith.constant 1.000000e+00 : f32
    %243 = vector.broadcast %cst_86 : f32 to vector<8x32xf32>
    %244 = arith.subf %242, %243 : vector<8x32xf32>
    %245 = vector.extract_strided_slice %237 {offsets = [0, 96], sizes = [8, 32], strides = [1, 1]} : vector<8x128xf32> to vector<8x32xf32>
    %246 = arith.mulf %239, %226 : vector<8x32xf32>
    %247 = arith.mulf %238, %244 : vector<8x32xf32>
    %248 = arith.addf %246, %247 : vector<8x32xf32>
    %249 = math.tanh %248 : vector<8x32xf32>
    %250 = arith.mulf %245, %249 : vector<8x32xf32>
    %c1_i32_87 = arith.constant 1 : i32
    %c8_i32_88 = arith.constant 8 : i32
    %251 = arith.muli %c1_i32_87, %c8_i32_88 : i32
    %252 = tpu.assume_multiple %251, 8 : i32
    %253 = arith.index_cast %252 : i32 to index
    %c0_89 = arith.constant 0 : index
    %254 = vector.load %arg10[%253, %c0_89] : memref<64x128xf32, #tpu.memory_space<vmem>>, vector<8x128xf32>
    %cst_90 = arith.constant dense<0.000000e+00> : vector<8x128xf32>
    %255 = tpu.matmul %250, %224, %cst_90 {dimension_numbers = #tpu.dot_dimension_numbers<[1], [0], [0], [1], [0, 0, 1, 1], [], []>} : vector<8x32xf32>, vector<32x128xf32>, vector<8x128xf32> -> vector<8x128xf32>
    %256 = arith.addf %254, %255 : vector<8x128xf32>
    %257 = arith.negf %256 : vector<8x128xf32>
    %258 = math.exp %257 : vector<8x128xf32>
    %cst_91 = arith.constant 1.000000e+00 : f32
    %259 = vector.broadcast %cst_91 : f32 to vector<8x128xf32>
    %260 = arith.addf %259, %258 : vector<8x128xf32>
    %261 = arith.divf %259, %260 : vector<8x128xf32>
    %262 = vector.extract_strided_slice %261 {offsets = [0, 0], sizes = [8, 32], strides = [1, 1]} : vector<8x128xf32> to vector<8x32xf32>
    %263 = vector.extract_strided_slice %261 {offsets = [0, 32], sizes = [8, 32], strides = [1, 1]} : vector<8x128xf32> to vector<8x32xf32>
    %264 = vector.extract_strided_slice %261 {offsets = [0, 64], sizes = [8, 32], strides = [1, 1]} : vector<8x128xf32> to vector<8x32xf32>
    %cst_92 = arith.constant 2.000000e+00 : f32
    %265 = vector.broadcast %cst_92 : f32 to vector<8x32xf32>
    %266 = arith.mulf %265, %264 : vector<8x32xf32>
    %cst_93 = arith.constant 1.000000e+00 : f32
    %267 = vector.broadcast %cst_93 : f32 to vector<8x32xf32>
    %268 = arith.subf %266, %267 : vector<8x32xf32>
    %269 = vector.extract_strided_slice %261 {offsets = [0, 96], sizes = [8, 32], strides = [1, 1]} : vector<8x128xf32> to vector<8x32xf32>
    %270 = arith.mulf %263, %248 : vector<8x32xf32>
    %271 = arith.mulf %262, %268 : vector<8x32xf32>
    %272 = arith.addf %270, %271 : vector<8x32xf32>
    %273 = math.tanh %272 : vector<8x32xf32>
    %274 = arith.mulf %269, %273 : vector<8x32xf32>
    %c2_i32_94 = arith.constant 2 : i32
    %c8_i32_95 = arith.constant 8 : i32
    %275 = arith.muli %c2_i32_94, %c8_i32_95 : i32
    %276 = tpu.assume_multiple %275, 8 : i32
    %277 = arith.index_cast %276 : i32 to index
    %c0_96 = arith.constant 0 : index
    %278 = vector.load %arg10[%277, %c0_96] : memref<64x128xf32, #tpu.memory_space<vmem>>, vector<8x128xf32>
    %cst_97 = arith.constant dense<0.000000e+00> : vector<8x128xf32>
    %279 = tpu.matmul %274, %224, %cst_97 {dimension_numbers = #tpu.dot_dimension_numbers<[1], [0], [0], [1], [0, 0, 1, 1], [], []>} : vector<8x32xf32>, vector<32x128xf32>, vector<8x128xf32> -> vector<8x128xf32>
    %280 = arith.addf %278, %279 : vector<8x128xf32>
    %281 = arith.negf %280 : vector<8x128xf32>
    %282 = math.exp %281 : vector<8x128xf32>
    %cst_98 = arith.constant 1.000000e+00 : f32
    %283 = vector.broadcast %cst_98 : f32 to vector<8x128xf32>
    %284 = arith.addf %283, %282 : vector<8x128xf32>
    %285 = arith.divf %283, %284 : vector<8x128xf32>
    %286 = vector.extract_strided_slice %285 {offsets = [0, 0], sizes = [8, 32], strides = [1, 1]} : vector<8x128xf32> to vector<8x32xf32>
    %287 = vector.extract_strided_slice %285 {offsets = [0, 32], sizes = [8, 32], strides = [1, 1]} : vector<8x128xf32> to vector<8x32xf32>
    %288 = vector.extract_strided_slice %285 {offsets = [0, 64], sizes = [8, 32], strides = [1, 1]} : vector<8x128xf32> to vector<8x32xf32>
    %cst_99 = arith.constant 2.000000e+00 : f32
    %289 = vector.broadcast %cst_99 : f32 to vector<8x32xf32>
    %290 = arith.mulf %289, %288 : vector<8x32xf32>
    %cst_100 = arith.constant 1.000000e+00 : f32
    %291 = vector.broadcast %cst_100 : f32 to vector<8x32xf32>
    %292 = arith.subf %290, %291 : vector<8x32xf32>
    %293 = vector.extract_strided_slice %285 {offsets = [0, 96], sizes = [8, 32], strides = [1, 1]} : vector<8x128xf32> to vector<8x32xf32>
    %294 = arith.mulf %287, %272 : vector<8x32xf32>
    %295 = arith.mulf %286, %292 : vector<8x32xf32>
    %296 = arith.addf %294, %295 : vector<8x32xf32>
    %297 = math.tanh %296 : vector<8x32xf32>
    %298 = arith.mulf %293, %297 : vector<8x32xf32>
    %c3_i32_101 = arith.constant 3 : i32
    %c8_i32_102 = arith.constant 8 : i32
    %299 = arith.muli %c3_i32_101, %c8_i32_102 : i32
    %300 = tpu.assume_multiple %299, 8 : i32
    %301 = arith.index_cast %300 : i32 to index
    %c0_103 = arith.constant 0 : index
    %302 = vector.load %arg10[%301, %c0_103] : memref<64x128xf32, #tpu.memory_space<vmem>>, vector<8x128xf32>
    %cst_104 = arith.constant dense<0.000000e+00> : vector<8x128xf32>
    %303 = tpu.matmul %298, %224, %cst_104 {dimension_numbers = #tpu.dot_dimension_numbers<[1], [0], [0], [1], [0, 0, 1, 1], [], []>} : vector<8x32xf32>, vector<32x128xf32>, vector<8x128xf32> -> vector<8x128xf32>
    %304 = arith.addf %302, %303 : vector<8x128xf32>
    %305 = arith.negf %304 : vector<8x128xf32>
    %306 = math.exp %305 : vector<8x128xf32>
    %cst_105 = arith.constant 1.000000e+00 : f32
    %307 = vector.broadcast %cst_105 : f32 to vector<8x128xf32>
    %308 = arith.addf %307, %306 : vector<8x128xf32>
    %309 = arith.divf %307, %308 : vector<8x128xf32>
    %310 = vector.extract_strided_slice %309 {offsets = [0, 0], sizes = [8, 32], strides = [1, 1]} : vector<8x128xf32> to vector<8x32xf32>
    %311 = vector.extract_strided_slice %309 {offsets = [0, 32], sizes = [8, 32], strides = [1, 1]} : vector<8x128xf32> to vector<8x32xf32>
    %312 = vector.extract_strided_slice %309 {offsets = [0, 64], sizes = [8, 32], strides = [1, 1]} : vector<8x128xf32> to vector<8x32xf32>
    %cst_106 = arith.constant 2.000000e+00 : f32
    %313 = vector.broadcast %cst_106 : f32 to vector<8x32xf32>
    %314 = arith.mulf %313, %312 : vector<8x32xf32>
    %cst_107 = arith.constant 1.000000e+00 : f32
    %315 = vector.broadcast %cst_107 : f32 to vector<8x32xf32>
    %316 = arith.subf %314, %315 : vector<8x32xf32>
    %317 = vector.extract_strided_slice %309 {offsets = [0, 96], sizes = [8, 32], strides = [1, 1]} : vector<8x128xf32> to vector<8x32xf32>
    %318 = arith.mulf %311, %296 : vector<8x32xf32>
    %319 = arith.mulf %310, %316 : vector<8x32xf32>
    %320 = arith.addf %318, %319 : vector<8x32xf32>
    %321 = math.tanh %320 : vector<8x32xf32>
    %322 = arith.mulf %317, %321 : vector<8x32xf32>
    %c4_i32_108 = arith.constant 4 : i32
    %c8_i32_109 = arith.constant 8 : i32
    %323 = arith.muli %c4_i32_108, %c8_i32_109 : i32
    %324 = tpu.assume_multiple %323, 8 : i32
    %325 = arith.index_cast %324 : i32 to index
    %c0_110 = arith.constant 0 : index
    %326 = vector.load %arg10[%325, %c0_110] : memref<64x128xf32, #tpu.memory_space<vmem>>, vector<8x128xf32>
    %cst_111 = arith.constant dense<0.000000e+00> : vector<8x128xf32>
    %327 = tpu.matmul %322, %224, %cst_111 {dimension_numbers = #tpu.dot_dimension_numbers<[1], [0], [0], [1], [0, 0, 1, 1], [], []>} : vector<8x32xf32>, vector<32x128xf32>, vector<8x128xf32> -> vector<8x128xf32>
    %328 = arith.addf %326, %327 : vector<8x128xf32>
    %329 = arith.negf %328 : vector<8x128xf32>
    %330 = math.exp %329 : vector<8x128xf32>
    %cst_112 = arith.constant 1.000000e+00 : f32
    %331 = vector.broadcast %cst_112 : f32 to vector<8x128xf32>
    %332 = arith.addf %331, %330 : vector<8x128xf32>
    %333 = arith.divf %331, %332 : vector<8x128xf32>
    %334 = vector.extract_strided_slice %333 {offsets = [0, 0], sizes = [8, 32], strides = [1, 1]} : vector<8x128xf32> to vector<8x32xf32>
    %335 = vector.extract_strided_slice %333 {offsets = [0, 32], sizes = [8, 32], strides = [1, 1]} : vector<8x128xf32> to vector<8x32xf32>
    %336 = vector.extract_strided_slice %333 {offsets = [0, 64], sizes = [8, 32], strides = [1, 1]} : vector<8x128xf32> to vector<8x32xf32>
    %cst_113 = arith.constant 2.000000e+00 : f32
    %337 = vector.broadcast %cst_113 : f32 to vector<8x32xf32>
    %338 = arith.mulf %337, %336 : vector<8x32xf32>
    %cst_114 = arith.constant 1.000000e+00 : f32
    %339 = vector.broadcast %cst_114 : f32 to vector<8x32xf32>
    %340 = arith.subf %338, %339 : vector<8x32xf32>
    %341 = vector.extract_strided_slice %333 {offsets = [0, 96], sizes = [8, 32], strides = [1, 1]} : vector<8x128xf32> to vector<8x32xf32>
    %342 = arith.mulf %335, %320 : vector<8x32xf32>
    %343 = arith.mulf %334, %340 : vector<8x32xf32>
    %344 = arith.addf %342, %343 : vector<8x32xf32>
    %345 = math.tanh %344 : vector<8x32xf32>
    %346 = arith.mulf %341, %345 : vector<8x32xf32>
    %c5_i32_115 = arith.constant 5 : i32
    %c8_i32_116 = arith.constant 8 : i32
    %347 = arith.muli %c5_i32_115, %c8_i32_116 : i32
    %348 = tpu.assume_multiple %347, 8 : i32
    %349 = arith.index_cast %348 : i32 to index
    %c0_117 = arith.constant 0 : index
    %350 = vector.load %arg10[%349, %c0_117] : memref<64x128xf32, #tpu.memory_space<vmem>>, vector<8x128xf32>
    %cst_118 = arith.constant dense<0.000000e+00> : vector<8x128xf32>
    %351 = tpu.matmul %346, %224, %cst_118 {dimension_numbers = #tpu.dot_dimension_numbers<[1], [0], [0], [1], [0, 0, 1, 1], [], []>} : vector<8x32xf32>, vector<32x128xf32>, vector<8x128xf32> -> vector<8x128xf32>
    %352 = arith.addf %350, %351 : vector<8x128xf32>
    %353 = arith.negf %352 : vector<8x128xf32>
    %354 = math.exp %353 : vector<8x128xf32>
    %cst_119 = arith.constant 1.000000e+00 : f32
    %355 = vector.broadcast %cst_119 : f32 to vector<8x128xf32>
    %356 = arith.addf %355, %354 : vector<8x128xf32>
    %357 = arith.divf %355, %356 : vector<8x128xf32>
    %358 = vector.extract_strided_slice %357 {offsets = [0, 0], sizes = [8, 32], strides = [1, 1]} : vector<8x128xf32> to vector<8x32xf32>
    %359 = vector.extract_strided_slice %357 {offsets = [0, 32], sizes = [8, 32], strides = [1, 1]} : vector<8x128xf32> to vector<8x32xf32>
    %360 = vector.extract_strided_slice %357 {offsets = [0, 64], sizes = [8, 32], strides = [1, 1]} : vector<8x128xf32> to vector<8x32xf32>
    %cst_120 = arith.constant 2.000000e+00 : f32
    %361 = vector.broadcast %cst_120 : f32 to vector<8x32xf32>
    %362 = arith.mulf %361, %360 : vector<8x32xf32>
    %cst_121 = arith.constant 1.000000e+00 : f32
    %363 = vector.broadcast %cst_121 : f32 to vector<8x32xf32>
    %364 = arith.subf %362, %363 : vector<8x32xf32>
    %365 = vector.extract_strided_slice %357 {offsets = [0, 96], sizes = [8, 32], strides = [1, 1]} : vector<8x128xf32> to vector<8x32xf32>
    %366 = arith.mulf %359, %344 : vector<8x32xf32>
    %367 = arith.mulf %358, %364 : vector<8x32xf32>
    %368 = arith.addf %366, %367 : vector<8x32xf32>
    %369 = math.tanh %368 : vector<8x32xf32>
    %370 = arith.mulf %365, %369 : vector<8x32xf32>
    %c6_i32_122 = arith.constant 6 : i32
    %c8_i32_123 = arith.constant 8 : i32
    %371 = arith.muli %c6_i32_122, %c8_i32_123 : i32
    %372 = tpu.assume_multiple %371, 8 : i32
    %373 = arith.index_cast %372 : i32 to index
    %c0_124 = arith.constant 0 : index
    %374 = vector.load %arg10[%373, %c0_124] : memref<64x128xf32, #tpu.memory_space<vmem>>, vector<8x128xf32>
    %cst_125 = arith.constant dense<0.000000e+00> : vector<8x128xf32>
    %375 = tpu.matmul %370, %224, %cst_125 {dimension_numbers = #tpu.dot_dimension_numbers<[1], [0], [0], [1], [0, 0, 1, 1], [], []>} : vector<8x32xf32>, vector<32x128xf32>, vector<8x128xf32> -> vector<8x128xf32>
    %376 = arith.addf %374, %375 : vector<8x128xf32>
    %377 = arith.negf %376 : vector<8x128xf32>
    %378 = math.exp %377 : vector<8x128xf32>
    %cst_126 = arith.constant 1.000000e+00 : f32
    %379 = vector.broadcast %cst_126 : f32 to vector<8x128xf32>
    %380 = arith.addf %379, %378 : vector<8x128xf32>
    %381 = arith.divf %379, %380 : vector<8x128xf32>
    %382 = vector.extract_strided_slice %381 {offsets = [0, 0], sizes = [8, 32], strides = [1, 1]} : vector<8x128xf32> to vector<8x32xf32>
    %383 = vector.extract_strided_slice %381 {offsets = [0, 32], sizes = [8, 32], strides = [1, 1]} : vector<8x128xf32> to vector<8x32xf32>
    %384 = vector.extract_strided_slice %381 {offsets = [0, 64], sizes = [8, 32], strides = [1, 1]} : vector<8x128xf32> to vector<8x32xf32>
    %cst_127 = arith.constant 2.000000e+00 : f32
    %385 = vector.broadcast %cst_127 : f32 to vector<8x32xf32>
    %386 = arith.mulf %385, %384 : vector<8x32xf32>
    %cst_128 = arith.constant 1.000000e+00 : f32
    %387 = vector.broadcast %cst_128 : f32 to vector<8x32xf32>
    %388 = arith.subf %386, %387 : vector<8x32xf32>
    %389 = vector.extract_strided_slice %381 {offsets = [0, 96], sizes = [8, 32], strides = [1, 1]} : vector<8x128xf32> to vector<8x32xf32>
    %390 = arith.mulf %383, %368 : vector<8x32xf32>
    %391 = arith.mulf %382, %388 : vector<8x32xf32>
    %392 = arith.addf %390, %391 : vector<8x32xf32>
    %393 = math.tanh %392 : vector<8x32xf32>
    %394 = arith.mulf %389, %393 : vector<8x32xf32>
    %c7_i32_129 = arith.constant 7 : i32
    %c8_i32_130 = arith.constant 8 : i32
    %395 = arith.muli %c7_i32_129, %c8_i32_130 : i32
    %396 = tpu.assume_multiple %395, 8 : i32
    %397 = arith.index_cast %396 : i32 to index
    %c0_131 = arith.constant 0 : index
    %398 = vector.load %arg10[%397, %c0_131] : memref<64x128xf32, #tpu.memory_space<vmem>>, vector<8x128xf32>
    %cst_132 = arith.constant dense<0.000000e+00> : vector<8x128xf32>
    %399 = tpu.matmul %394, %224, %cst_132 {dimension_numbers = #tpu.dot_dimension_numbers<[1], [0], [0], [1], [0, 0, 1, 1], [], []>} : vector<8x32xf32>, vector<32x128xf32>, vector<8x128xf32> -> vector<8x128xf32>
    %400 = arith.addf %398, %399 : vector<8x128xf32>
    %401 = arith.negf %400 : vector<8x128xf32>
    %402 = math.exp %401 : vector<8x128xf32>
    %cst_133 = arith.constant 1.000000e+00 : f32
    %403 = vector.broadcast %cst_133 : f32 to vector<8x128xf32>
    %404 = arith.addf %403, %402 : vector<8x128xf32>
    %405 = arith.divf %403, %404 : vector<8x128xf32>
    %406 = vector.extract_strided_slice %405 {offsets = [0, 0], sizes = [8, 32], strides = [1, 1]} : vector<8x128xf32> to vector<8x32xf32>
    %407 = vector.extract_strided_slice %405 {offsets = [0, 32], sizes = [8, 32], strides = [1, 1]} : vector<8x128xf32> to vector<8x32xf32>
    %408 = vector.extract_strided_slice %405 {offsets = [0, 64], sizes = [8, 32], strides = [1, 1]} : vector<8x128xf32> to vector<8x32xf32>
    %cst_134 = arith.constant 2.000000e+00 : f32
    %409 = vector.broadcast %cst_134 : f32 to vector<8x32xf32>
    %410 = arith.mulf %409, %408 : vector<8x32xf32>
    %cst_135 = arith.constant 1.000000e+00 : f32
    %411 = vector.broadcast %cst_135 : f32 to vector<8x32xf32>
    %412 = arith.subf %410, %411 : vector<8x32xf32>
    %413 = vector.extract_strided_slice %405 {offsets = [0, 96], sizes = [8, 32], strides = [1, 1]} : vector<8x128xf32> to vector<8x32xf32>
    %414 = arith.mulf %407, %392 : vector<8x32xf32>
    %415 = arith.mulf %406, %412 : vector<8x32xf32>
    %416 = arith.addf %414, %415 : vector<8x32xf32>
    %417 = math.tanh %416 : vector<8x32xf32>
    %418 = arith.mulf %413, %417 : vector<8x32xf32>
    %c8_i32_136 = arith.constant 8 : i32
    %c0_137 = arith.constant 0 : index
    %c0_138 = arith.constant 0 : index
    %419 = vector.load %arg7[%c0_137, %c0_138] : memref<32x4xf32, #tpu.memory_space<vmem>>, vector<32x4xf32>
    %cst_139 = arith.constant dense<0.000000e+00> : vector<8x4xf32>
    %420 = tpu.matmul %418, %419, %cst_139 {dimension_numbers = #tpu.dot_dimension_numbers<[1], [0], [0], [1], [0, 0, 1, 1], [], []>} : vector<8x32xf32>, vector<32x4xf32>, vector<8x4xf32> -> vector<8x4xf32>
    %c0_140 = arith.constant 0 : index
    %c0_141 = arith.constant 0 : index
    %421 = vector.load %arg8[%c0_140, %c0_141] : memref<1x4xf32, #tpu.memory_space<vmem>>, vector<1x4xf32>
    %422 = vector.broadcast %421 : vector<1x4xf32> to vector<8x4xf32>
    %423 = arith.addf %420, %422 : vector<8x4xf32>
    %424 = arith.negf %423 : vector<8x4xf32>
    %425 = math.exp %424 : vector<8x4xf32>
    %cst_142 = arith.constant 1.000000e+00 : f32
    %426 = vector.broadcast %cst_142 : f32 to vector<8x4xf32>
    %427 = arith.addf %426, %425 : vector<8x4xf32>
    %428 = arith.divf %426, %427 : vector<8x4xf32>
    %c0_143 = arith.constant 0 : index
    %c0_144 = arith.constant 0 : index
    %429 = vector.load %arg9[%c0_143, %c0_144] : memref<8x4xf32, #tpu.memory_space<vmem>>, vector<8x4xf32>
    tpu.vector_store %arg9[%c0_143, %c0_144], %428 {strides = array<i32>} : memref<8x4xf32, #tpu.memory_space<vmem>>, vector<8x4xf32>,
    return
  }
}

</mosaic_0001>

<llo_original>
// kernel: tpu_custom_call.1
$region0: #{tpu_custom_call.1}
  #allocation0 [shape = 'u32[]', space=smem, size = 0x4, offset = 0x4, fixed_abs, tag = 'smem constant byte address 0x4 - core index']
  #allocation1 [shape = 'u32[144,128]{1,0:T(1,128)}', space=vmem, size = 0x12000, scoped, tag = 'internal scratch']
  #allocation2 [shape = 'f32[64,128]{1,0:T(8,128)}', space=vmem, size = 0x8000, scoped, tag = 'scratch operand']
  #allocation3 [shape = 'f32[64,32]{1,0:T(8,128)}', space=vmem, size = 0x8000, scoped, tag = 'scratch operand']
  %s0 = inlined_call_operand.vmem [shape: f32[64,12], index: 0, kind: input, shape index: {}]
  %s1 = inlined_call_operand.vmem [shape: f32[12,128], index: 1, kind: input, shape index: {}]
  %s2 = inlined_call_operand.vmem [shape: f32[64,128], index: 2, kind: input, shape index: {}]
  %s3 = inlined_call_operand.vmem [shape: f32[32,128], index: 3, kind: input, shape index: {}]
  %s4 = inlined_call_operand.hbm [shape: f32[32,128], index: 4, kind: input, shape index: {}]
  %s5 = inlined_call_operand.vmem [shape: f32[1,128], index: 5, kind: input, shape index: {}]
  %s6 = inlined_call_operand.hbm [shape: f32[32,128], index: 6, kind: input, shape index: {}]
  %s7 = inlined_call_operand.vmem [shape: f32[32,4], index: 7, kind: input, shape index: {}]
  %s8 = inlined_call_operand.vmem [shape: f32[1,4], index: 8, kind: input, shape index: {}]
  %s9 = inlined_call_operand.vmem [shape: f32[8,4], index: 9, kind: output, shape index: {}]
  %s10 = sld [smem:[#allocation0]]
  $region54: #{tpu_custom_call.1} parent=0
    _
  %s12 = ssub.s32 1, %s10
  %s13 = scalar_select 0, %s12, %s10
  $region1: #{tpu_custom_call.1} parent=0
    #allocation4 [shape = 'u8[16384]{0}', space=vmem, size = 0x4000, scoped, tag = 'input window, operand 4, single buffered']
    #allocation5 [shape = 's32[1]{0}', space=sflag, size = 0x4, scoped, tag = 'scoped memory for tpu_custom_call.1']
    #allocation6 [shape = 'u8[16384]{0}', space=vmem, size = 0x4000, scoped, tag = 'input window, operand 6, single buffered']
    #allocation7 [shape = 's32[1]{0}', space=sflag, size = 0x4, scoped, tag = 'scoped memory for tpu_custom_call.1']
    %14 = vsyncpa [#allocation5], 0
    %15 = vsyncpa [#allocation7], 0
    // Predicated region
    $region2: #{tpu_custom_call.1} parent=1 // pred_check
      _
    $region3: #{tpu_custom_call.1} parent=1 // pred_check_branch
      %17 = sbr.rel (0) target = $region5
    $region4: #{tpu_custom_call.1} parent=1 // pred_region
      _
    $region5: #{tpu_custom_call.1} parent=1 // pred_fallthru
      _
    // Predicated region
    $region6: #{tpu_custom_call.1} parent=1 // pred_check
      _
    $region7: #{tpu_custom_call.1} parent=1 // pred_check_branch
      %19 = sbr.rel (0) target = $region9
    $region8: #{tpu_custom_call.1} parent=1 // pred_region
      _
    $region9: #{tpu_custom_call.1} parent=1 // pred_fallthru
      _
    // Predicated region
    $region10: #{tpu_custom_call.1} parent=1 // pred_check
      _
    $region11: #{tpu_custom_call.1} parent=1 // pred_check_branch
      %21 = sbr.rel (0) target = $region13
    $region12: #{tpu_custom_call.1} parent=1 // pred_region
      _
    $region13: #{tpu_custom_call.1} parent=1 // pred_fallthru
      _
    // Predicated region
    $region14: #{tpu_custom_call.1} parent=1 // pred_check
      _
    $region15: #{tpu_custom_call.1} parent=1 // pred_check_branch
      %23 = sbr.rel (0) target = $region17
    $region16: #{tpu_custom_call.1} parent=1 // pred_region
      _
    $region17: #{tpu_custom_call.1} parent=1 // pred_fallthru
      _
    // Predicated region
    $region18: #{tpu_custom_call.1} parent=1 // pred_check
      _
    $region19: #{tpu_custom_call.1} parent=1 // pred_check_branch
      %25 = sbr.rel (0) target = $region21
    $region20: #{tpu_custom_call.1} parent=1 // pred_region
      %s27 = ssub.s32 512, 512
      %28 = vsyncadd [#allocation5], %s27
      %s29 = sshll.u32 [#allocation4], 4
      %s30 = int_to_ptr.vmem [resolvable:$true] %s29
      %35 = dma.hbm_to_vmem [thread:$0]  %s4, 512, %s30, [#allocation5], 128, 128, 8
    $region21: #{tpu_custom_call.1} parent=1 // pred_fallthru
      _
    // Predicated region
    $region22: #{tpu_custom_call.1} parent=1 // pred_check
      _
    $region23: #{tpu_custom_call.1} parent=1 // pred_check_branch
      %37 = sbr.rel (0) target = $region25
    $region24: #{tpu_custom_call.1} parent=1 // pred_region
      _
    $region25: #{tpu_custom_call.1} parent=1 // pred_fallthru
      _
    // Predicated region
    $region26: #{tpu_custom_call.1} parent=1 // pred_check
      _
    $region27: #{tpu_custom_call.1} parent=1 // pred_check_branch
      %39 = sbr.rel (0) target = $region29
    $region28: #{tpu_custom_call.1} parent=1 // pred_region
      %s41 = ssub.s32 512, 512
      %42 = vsyncadd [#allocation7], %s41
      %s43 = sshll.u32 [#allocation6], 4
      %s44 = int_to_ptr.vmem [resolvable:$true] %s43
      %49 = dma.hbm_to_vmem [thread:$0]  %s6, 512, %s44, [#allocation7], 128, 128, 8
    $region29: #{tpu_custom_call.1} parent=1 // pred_fallthru
      _
    // Predicated region
    $region30: #{tpu_custom_call.1} parent=1 // pred_check
      _
    $region31: #{tpu_custom_call.1} parent=1 // pred_check_branch
      %51 = sbr.rel (0) target = $region33
    $region32: #{tpu_custom_call.1} parent=1 // pred_region
      _
    $region33: #{tpu_custom_call.1} parent=1 // pred_fallthru
      _
    // Predicated region
    $region34: #{tpu_custom_call.1} parent=1 // pred_check
      _
    $region35: #{tpu_custom_call.1} parent=1 // pred_check_branch
      %53 = sbr.rel (0) target = $region37
    $region36: #{tpu_custom_call.1} parent=1 // pred_region
      _
    $region37: #{tpu_custom_call.1} parent=1 // pred_fallthru
      _
    // Predicated region
    $region38: #{tpu_custom_call.1} parent=1 // pred_check
      _
    $region39: #{tpu_custom_call.1} parent=1 // pred_check_branch
      %55 = sbr.rel (0) target = $region41
    $region40: #{tpu_custom_call.1} parent=1 // pred_region
      %56 = dma.done [#allocation5], 512
    $region41: #{tpu_custom_call.1} parent=1 // pred_fallthru
      _
    // Predicated region
    $region42: #{tpu_custom_call.1} parent=1 // pred_check
      _
    $region43: #{tpu_custom_call.1} parent=1 // pred_check_branch
      %58 = sbr.rel (0) target = $region45
    $region44: #{tpu_custom_call.1} parent=1 // pred_region
      %59 = dma.done [#allocation7], 512
    $region45: #{tpu_custom_call.1} parent=1 // pred_fallthru
      _
    %v60 = vld [vmem:[%s0] sm:$0xff]
    %v61 = vld [vmem:[%s0 + $0x8] sm:$0xff]
    %v62 = vld [vmem:[%s0 + $0x10] sm:$0xff]
    %v63 = vld [vmem:[%s0 + $0x18] sm:$0xff]
    %v64 = vld [vmem:[%s0 + $0x20] sm:$0xff]
    %v65 = vld [vmem:[%s0 + $0x28] sm:$0xff]
    %v66 = vld [vmem:[%s0 + $0x30] sm:$0xff]
    %v67 = vld [vmem:[%s0 + $0x38] sm:$0xff]
    %v68 = vld [vmem:[%s1] sm:$0xff]
    %v69 = vld [vmem:[%s1 + $0x8] sm:$0xf]
    %v70 = vld [vmem:[%s2] sm:$0xff]
    %v71 = vld [vmem:[%s2 + $0x8] sm:$0xff]
    %v72 = vld [vmem:[%s2 + $0x10] sm:$0xff]
    %v73 = vld [vmem:[%s2 + $0x18] sm:$0xff]
    %v74 = vld [vmem:[%s2 + $0x20] sm:$0xff]
    %v75 = vld [vmem:[%s2 + $0x28] sm:$0xff]
    %v76 = vld [vmem:[%s2 + $0x30] sm:$0xff]
    %v77 = vld [vmem:[%s2 + $0x38] sm:$0xff]
    %vm78 = vcmask 97280
    %v80 = vsel %vm78, %v60, 0
    %v83 = vsel %vm78, %v61, 0
    %v86 = vsel %vm78, %v62, 0
    %v89 = vsel %vm78, %v63, 0
    %v92 = vsel %vm78, %v64, 0
    %v95 = vsel %vm78, %v65, 0
    %v98 = vsel %vm78, %v66, 0
    %v101 = vsel %vm78, %v67, 0
    %vm103 = vcmask 1043456
    %v105 = vsel %vm103, %v69, 0
    %107 = vmatprep.subr.mxu0 0.0
    %108 = vmatpush1.msra.mxu0 0.0
    %109 = vmatprep.subr.mxu0 0.0
    %110 = vmatpush1.msra.mxu0 0.0
    %111 = vmatprep.subr.mxu0 0.0
    %112 = vmatpush1.msra.mxu0 0.0
    %113 = vmatprep.subr.mxu0 0.0
    %114 = vmatpush1.msra.mxu0 0.0
    %115 = vmatprep.subr.mxu0 0.0
    %116 = vmatpush1.msra.mxu0 0.0
    %117 = vmatprep.subr.mxu0 0.0
    %118 = vmatpush1.msra.mxu0 0.0
    %119 = vmatprep.subr.mxu0 0.0
    %120 = vmatpush1.msra.mxu0 0.0
    %121 = vmatprep.subr.mxu0 0.0
    %122 = vmatpush1.msra.mxu0 0.0
    %123 = vmatprep.subr.mxu0 0.0
    %124 = vmatpush1.msra.mxu0 0.0
    %125 = vmatprep.subr.mxu0 0.0
    %126 = vmatpush1.msra.mxu0 0.0
    %127 = vmatprep.subr.mxu0 0.0
    %128 = vmatpush1.msra.mxu0 0.0
    %129 = vmatprep.subr.mxu0 0.0
    %130 = vmatpush1.msra.mxu0 0.0
    %131 = vmatprep.subr.mxu0 0.0
    %132 = vmatpush1.msra.mxu0 0.0
    %133 = vmatprep.subr.mxu0 0.0
    %134 = vmatpush1.msra.mxu0 0.0
    %135 = vmatprep.subr.mxu0 0.0
    %136 = vmatpush1.msra.mxu0 %v105
    %137 = vmatprep.subr.mxu0 0.0
    %138 = vmatpush1.msra.mxu0 %v68
    %139 = vmatprep.subr.mxu0 0.0
    %140 = vmatpush2.msra.mxu0 0.0
    %141 = vmatprep.subr.mxu0 0.0
    %142 = vmatpush2.msra.mxu0 0.0
    %143 = vmatprep.subr.mxu0 0.0
    %144 = vmatpush2.msra.mxu0 0.0
    %145 = vmatprep.subr.mxu0 0.0
    %146 = vmatpush2.msra.mxu0 0.0
    %147 = vmatprep.subr.mxu0 0.0
    %148 = vmatpush2.msra.mxu0 0.0
    %149 = vmatprep.subr.mxu0 0.0
    %150 = vmatpush2.msra.mxu0 0.0
    %151 = vmatprep.subr.mxu0 0.0
    %152 = vmatpush2.msra.mxu0 0.0
    %153 = vmatprep.subr.mxu0 0.0
    %154 = vmatpush2.msra.mxu0 0.0
    %155 = vmatprep.subr.mxu0 0.0
    %156 = vmatpush2.msra.mxu0 0.0
    %157 = vmatprep.subr.mxu0 0.0
    %158 = vmatpush2.msra.mxu0 0.0
    %159 = vmatprep.subr.mxu0 0.0
    %160 = vmatpush2.msra.mxu0 0.0
    %161 = vmatprep.subr.mxu0 0.0
    %162 = vmatpush2.msra.mxu0 0.0
    %163 = vmatprep.subr.mxu0 0.0
    %164 = vmatpush2.msra.mxu0 0.0
    %165 = vmatprep.subr.mxu0 0.0
    %166 = vmatpush2.msra.mxu0 0.0
    %167 = vmatprep.subr.mxu0 0.0
    %168 = vmatpush2.msra.mxu0 0.0
    %169 = vmatprep.subr.mxu0 0.0
    %170 = vmatpush2.msra.mxu0 0.0
    %171 = vmatprep.mubr.f32.mxu0 0.0
    %172 = vmatmul.mubr.f32.gmra.mxu0 %v80
    %v173 = vpop.f32.mrf.mxu0
    %v174 = vadd.f32 %v70, %v173
    %v175 = vpop.f32.mrf.mxu0
    %176 = vmatprep.mubr.f32.mxu0 0.0
    %177 = vmatmul.mubr.f32.gmra.mxu0 %v83
    %v178 = vpop.f32.mrf.mxu0
    %v179 = vadd.f32 %v71, %v178
    %v180 = vpop.f32.mrf.mxu0
    %181 = vmatprep.mubr.f32.mxu0 0.0
    %182 = vmatmul.mubr.f32.gmra.mxu0 %v86
    %v183 = vpop.f32.mrf.mxu0
    %v184 = vadd.f32 %v72, %v183
    %v185 = vpop.f32.mrf.mxu0
    %186 = vmatprep.mubr.f32.mxu0 0.0
    %187 = vmatmul.mubr.f32.gmra.mxu0 %v89
    %v188 = vpop.f32.mrf.mxu0
    %v189 = vadd.f32 %v73, %v188
    %v190 = vpop.f32.mrf.mxu0
    %191 = vmatprep.mubr.f32.mxu0 0.0
    %192 = vmatmul.mubr.f32.gmra.mxu0 %v92
    %v193 = vpop.f32.mrf.mxu0
    %v194 = vadd.f32 %v74, %v193
    %v195 = vpop.f32.mrf.mxu0
    %196 = vmatprep.mubr.f32.mxu0 0.0
    %197 = vmatmul.mubr.f32.gmra.mxu0 %v95
    %v198 = vpop.f32.mrf.mxu0
    %v199 = vadd.f32 %v75, %v198
    %v200 = vpop.f32.mrf.mxu0
    %201 = vmatprep.mubr.f32.mxu0 0.0
    %202 = vmatmul.mubr.f32.gmra.mxu0 %v98
    %v203 = vpop.f32.mrf.mxu0
    %v204 = vadd.f32 %v76, %v203
    %v205 = vpop.f32.mrf.mxu0
    %206 = vmatprep.mubr.f32.mxu0 0.0
    %207 = vmatmul.mubr.f32.gmra.mxu0 %v101
    %v208 = vpop.f32.mrf.mxu0
    %v209 = vadd.f32 %v77, %v208
    %v210 = vpop.f32.mrf.mxu0
    %211 = vdwg.mxu0
    %212 = vst [vmem:[#allocation2] sm:$0xff] %v174
    %213 = vst [vmem:[#allocation2 + $0x8] sm:$0xff] %v179
    %214 = vst [vmem:[#allocation2 + $0x10] sm:$0xff] %v184
    %215 = vst [vmem:[#allocation2 + $0x18] sm:$0xff] %v189
    %216 = vst [vmem:[#allocation2 + $0x20] sm:$0xff] %v194
    %217 = vst [vmem:[#allocation2 + $0x28] sm:$0xff] %v199
    %218 = vst [vmem:[#allocation2 + $0x30] sm:$0xff] %v204
    %219 = vst [vmem:[#allocation2 + $0x38] sm:$0xff] %v209
    %v220 = vld [vmem:[%s3] sm:$0xff]
    %v221 = vld [vmem:[%s3 + $0x8] sm:$0xff]
    %v222 = vld [vmem:[%s3 + $0x10] sm:$0xff]
    %v223 = vld [vmem:[%s3 + $0x18] sm:$0xff]
    %v224 = vld [vmem:[#allocation2] sm:$0xff]
    %vm225 = vcmask 261120
    %v227 = vsel %vm225, 0.0, 0
    %229 = vmatprep.subr.mxu0 0.0
    %230 = vmatpush1.msra.mxu0 0.0
    %231 = vmatprep.subr.mxu0 0.0
    %232 = vmatpush1.msra.mxu0 0.0
    %233 = vmatprep.subr.mxu0 0.0
    %234 = vmatpush1.msra.mxu0 0.0
    %235 = vmatprep.subr.mxu0 0.0
    %236 = vmatpush1.msra.mxu0 0.0
    %237 = vmatprep.subr.mxu0 0.0
    %238 = vmatpush1.msra.mxu0 0.0
    %239 = vmatprep.subr.mxu0 0.0
    %240 = vmatpush1.msra.mxu0 0.0
    %241 = vmatprep.subr.mxu0 0.0
    %242 = vmatpush1.msra.mxu0 0.0
    %243 = vmatprep.subr.mxu0 0.0
    %244 = vmatpush1.msra.mxu0 0.0
    %245 = vmatprep.subr.mxu0 0.0
    %246 = vmatpush1.msra.mxu0 0.0
    %247 = vmatprep.subr.mxu0 0.0
    %248 = vmatpush1.msra.mxu0 0.0
    %249 = vmatprep.subr.mxu0 0.0
    %250 = vmatpush1.msra.mxu0 0.0
    %251 = vmatprep.subr.mxu0 0.0
    %252 = vmatpush1.msra.mxu0 0.0
    %253 = vmatprep.subr.mxu0 0.0
    %254 = vmatpush1.msra.mxu0 %v223
    %255 = vmatprep.subr.mxu0 0.0
    %256 = vmatpush1.msra.mxu0 %v222
    %257 = vmatprep.subr.mxu0 0.0
    %258 = vmatpush1.msra.mxu0 %v221
    %259 = vmatprep.subr.mxu0 0.0
    %260 = vmatpush1.msra.mxu0 %v220
    %261 = vmatprep.subr.mxu0 0.0
    %262 = vmatpush2.msra.mxu0 0.0
    %263 = vmatprep.subr.mxu0 0.0
    %264 = vmatpush2.msra.mxu0 0.0
    %265 = vmatprep.subr.mxu0 0.0
    %266 = vmatpush2.msra.mxu0 0.0
    %267 = vmatprep.subr.mxu0 0.0
    %268 = vmatpush2.msra.mxu0 0.0
    %269 = vmatprep.subr.mxu0 0.0
    %270 = vmatpush2.msra.mxu0 0.0
    %271 = vmatprep.subr.mxu0 0.0
    %272 = vmatpush2.msra.mxu0 0.0
    %273 = vmatprep.subr.mxu0 0.0
    %274 = vmatpush2.msra.mxu0 0.0
    %275 = vmatprep.subr.mxu0 0.0
    %276 = vmatpush2.msra.mxu0 0.0
    %277 = vmatprep.subr.mxu0 0.0
    %278 = vmatpush2.msra.mxu0 0.0
    %279 = vmatprep.subr.mxu0 0.0
    %280 = vmatpush2.msra.mxu0 0.0
    %281 = vmatprep.subr.mxu0 0.0
    %282 = vmatpush2.msra.mxu0 0.0
    %283 = vmatprep.subr.mxu0 0.0
    %284 = vmatpush2.msra.mxu0 0.0
    %285 = vmatprep.subr.mxu0 0.0
    %286 = vmatpush2.msra.mxu0 0.0
    %287 = vmatprep.subr.mxu0 0.0
    %288 = vmatpush2.msra.mxu0 0.0
    %289 = vmatprep.subr.mxu0 0.0
    %290 = vmatpush2.msra.mxu0 0.0
    %291 = vmatprep.subr.mxu0 0.0
    %292 = vmatpush2.msra.mxu0 0.0
    %293 = vmatprep.mubr.f32.mxu0 0.0
    %294 = vmatmul.mubr.f32.gmra.mxu0 %v227
    %v295 = vpop.f32.mrf.mxu0
    %v296 = vadd.f32 0.0, %v295
    %v297 = vpop.f32.mrf.mxu0
    %298 = vdwg.mxu0
    %v299 = vadd.f32 %v224, %v296
    %v300 = vxor.u32 %v299, 2147483648
    %v301 = vmul.f32 %v300, 1.442695
    %v302 = vpow.pop %v301
    %v303 = vadd.f32 %v302, 1.0
    %v304 = vrcp.pop %v303
    %v305 = vmul.f32 1.0, %v304
    %v306 = vmul.f32 %v305, 2.0
    %v307 = vsub.f32 %v306, 1.0
    %v308 = vmul.f32 %v305, 0.0
    %310 = vrot.lane.b32.xlu0 %v307, 64
    %v311 = vpop.permute.xlu0 %310
    %v313 = vmul.f32 %v305, %v311
    %315 = vrot.lane.b32.xlu0 %v313, 32
    %v316 = vpop.permute.xlu0 %315
    %v318 = vadd.f32 %v308, %v316
    %v319 = vtanh.pop %v318
    %321 = vrot.lane.b32.xlu0 %v319, 64
    %v322 = vpop.permute.xlu0 %321
    %v324 = vmul.f32 %v305, %v322
    %326 = vrot.lane.b32.xlu0 %v324, 32
    %v327 = vpop.permute.xlu0 %326
    %329 = vst.msk [vmem:[#allocation3] sm:$0xff] %vm225, %v327
    %s330 = scalar_lea.vmem [#allocation2], 8
    %v331 = vld [vmem:[%s330] sm:$0xff]
    %v332 = vsel %vm225, %v327, 0
    %334 = vmatprep.subr.mxu0 0.0
    %335 = vmatpush1.msra.mxu0 0.0
    %336 = vmatprep.subr.mxu0 0.0
    %337 = vmatpush1.msra.mxu0 0.0
    %338 = vmatprep.subr.mxu0 0.0
    %339 = vmatpush1.msra.mxu0 0.0
    %340 = vmatprep.subr.mxu0 0.0
    %341 = vmatpush1.msra.mxu0 0.0
    %342 = vmatprep.subr.mxu0 0.0
    %343 = vmatpush1.msra.mxu0 0.0
    %344 = vmatprep.subr.mxu0 0.0
    %345 = vmatpush1.msra.mxu0 0.0
    %346 = vmatprep.subr.mxu0 0.0
    %347 = vmatpush1.msra.mxu0 0.0
    %348 = vmatprep.subr.mxu0 0.0
    %349 = vmatpush1.msra.mxu0 0.0
    %350 = vmatprep.subr.mxu0 0.0
    %351 = vmatpush1.msra.mxu0 0.0
    %352 = vmatprep.subr.mxu0 0.0
    %353 = vmatpush1.msra.mxu0 0.0
    %354 = vmatprep.subr.mxu0 0.0
    %355 = vmatpush1.msra.mxu0 0.0
    %356 = vmatprep.subr.mxu0 0.0
    %357 = vmatpush1.msra.mxu0 0.0
    %358 = vmatprep.subr.mxu0 0.0
    %359 = vmatpush1.msra.mxu0 %v223
    %360 = vmatprep.subr.mxu0 0.0
    %361 = vmatpush1.msra.mxu0 %v222
    %362 = vmatprep.subr.mxu0 0.0
    %363 = vmatpush1.msra.mxu0 %v221
    %364 = vmatprep.subr.mxu0 0.0
    %365 = vmatpush1.msra.mxu0 %v220
    %366 = vmatprep.subr.mxu0 0.0
    %367 = vmatpush2.msra.mxu0 0.0
    %368 = vmatprep.subr.mxu0 0.0
    %369 = vmatpush2.msra.mxu0 0.0
    %370 = vmatprep.subr.mxu0 0.0
    %371 = vmatpush2.msra.mxu0 0.0
    %372 = vmatprep.subr.mxu0 0.0
    %373 = vmatpush2.msra.mxu0 0.0
    %374 = vmatprep.subr.mxu0 0.0
    %375 = vmatpush2.msra.mxu0 0.0
    %376 = vmatprep.subr.mxu0 0.0
    %377 = vmatpush2.msra.mxu0 0.0
    %378 = vmatprep.subr.mxu0 0.0
    %379 = vmatpush2.msra.mxu0 0.0
    %380 = vmatprep.subr.mxu0 0.0
    %381 = vmatpush2.msra.mxu0 0.0
    %382 = vmatprep.subr.mxu0 0.0
    %383 = vmatpush2.msra.mxu0 0.0
    %384 = vmatprep.subr.mxu0 0.0
    %385 = vmatpush2.msra.mxu0 0.0
    %386 = vmatprep.subr.mxu0 0.0
    %387 = vmatpush2.msra.mxu0 0.0
    %388 = vmatprep.subr.mxu0 0.0
    %389 = vmatpush2.msra.mxu0 0.0
    %390 = vmatprep.subr.mxu0 0.0
    %391 = vmatpush2.msra.mxu0 0.0
    %392 = vmatprep.subr.mxu0 0.0
    %393 = vmatpush2.msra.mxu0 0.0
    %394 = vmatprep.subr.mxu0 0.0
    %395 = vmatpush2.msra.mxu0 0.0
    %396 = vmatprep.subr.mxu0 0.0
    %397 = vmatpush2.msra.mxu0 0.0
    %398 = vmatprep.mubr.f32.mxu0 0.0
    %399 = vmatmul.mubr.f32.gmra.mxu0 %v332
    %v400 = vpop.f32.mrf.mxu0
    %v401 = vadd.f32 0.0, %v400
    %v402 = vpop.f32.mrf.mxu0
    %403 = vdwg.mxu0
    %v404 = vadd.f32 %v331, %v401
    %v405 = vxor.u32 %v404, 2147483648
    %v406 = vmul.f32 %v405, 1.442695
    %v407 = vpow.pop %v406
    %v408 = vadd.f32 %v407, 1.0
    %v409 = vrcp.pop %v408
    %v410 = vmul.f32 1.0, %v409
    %v411 = vmul.f32 %v410, 2.0
    %v412 = vsub.f32 %v411, 1.0
    %v413 = vmul.f32 %v410, %v318
    %415 = vrot.lane.b32.xlu0 %v412, 64
    %v416 = vpop.permute.xlu0 %415
    %v418 = vmul.f32 %v410, %v416
    %420 = vrot.lane.b32.xlu0 %v418, 32
    %v421 = vpop.permute.xlu0 %420
    %v423 = vadd.f32 %v413, %v421
    %v424 = vtanh.pop %v423
    %426 = vrot.lane.b32.xlu0 %v424, 64
    %v427 = vpop.permute.xlu0 %426
    %v429 = vmul.f32 %v410, %v427
    %431 = vrot.lane.b32.xlu0 %v429, 32
    %v432 = vpop.permute.xlu0 %431
    %s434 = scalar_lea.vmem [#allocation3], 8
    %435 = vst.msk [vmem:[%s434] sm:$0xff] %vm225, %v432
    %s436 = scalar_lea.vmem [#allocation2], 16
    %v437 = vld [vmem:[%s436] sm:$0xff]
    %v438 = vsel %vm225, %v432, 0
    %440 = vmatprep.subr.mxu0 0.0
    %441 = vmatpush1.msra.mxu0 0.0
    %442 = vmatprep.subr.mxu0 0.0
    %443 = vmatpush1.msra.mxu0 0.0
    %444 = vmatprep.subr.mxu0 0.0
    %445 = vmatpush1.msra.mxu0 0.0
    %446 = vmatprep.subr.mxu0 0.0
    %447 = vmatpush1.msra.mxu0 0.0
    %448 = vmatprep.subr.mxu0 0.0
    %449 = vmatpush1.msra.mxu0 0.0
    %450 = vmatprep.subr.mxu0 0.0
    %451 = vmatpush1.msra.mxu0 0.0
    %452 = vmatprep.subr.mxu0 0.0
    %453 = vmatpush1.msra.mxu0 0.0
    %454 = vmatprep.subr.mxu0 0.0
    %455 = vmatpush1.msra.mxu0 0.0
    %456 = vmatprep.subr.mxu0 0.0
    %457 = vmatpush1.msra.mxu0 0.0
    %458 = vmatprep.subr.mxu0 0.0
    %459 = vmatpush1.msra.mxu0 0.0
    %460 = vmatprep.subr.mxu0 0.0
    %461 = vmatpush1.msra.mxu0 0.0
    %462 = vmatprep.subr.mxu0 0.0
    %463 = vmatpush1.msra.mxu0 0.0
    %464 = vmatprep.subr.mxu0 0.0
    %465 = vmatpush1.msra.mxu0 %v223
    %466 = vmatprep.subr.mxu0 0.0
    %467 = vmatpush1.msra.mxu0 %v222
    %468 = vmatprep.subr.mxu0 0.0
    %469 = vmatpush1.msra.mxu0 %v221
    %470 = vmatprep.subr.mxu0 0.0
    %471 = vmatpush1.msra.mxu0 %v220
    %472 = vmatprep.subr.mxu0 0.0
    %473 = vmatpush2.msra.mxu0 0.0
    %474 = vmatprep.subr.mxu0 0.0
    %475 = vmatpush2.msra.mxu0 0.0
    %476 = vmatprep.subr.mxu0 0.0
    %477 = vmatpush2.msra.mxu0 0.0
    %478 = vmatprep.subr.mxu0 0.0
    %479 = vmatpush2.msra.mxu0 0.0
    %480 = vmatprep.subr.mxu0 0.0
    %481 = vmatpush2.msra.mxu0 0.0
    %482 = vmatprep.subr.mxu0 0.0
    %483 = vmatpush2.msra.mxu0 0.0
    %484 = vmatprep.subr.mxu0 0.0
    %485 = vmatpush2.msra.mxu0 0.0
    %486 = vmatprep.subr.mxu0 0.0
    %487 = vmatpush2.msra.mxu0 0.0
    %488 = vmatprep.subr.mxu0 0.0
    %489 = vmatpush2.msra.mxu0 0.0
    %490 = vmatprep.subr.mxu0 0.0
    %491 = vmatpush2.msra.mxu0 0.0
    %492 = vmatprep.subr.mxu0 0.0
    %493 = vmatpush2.msra.mxu0 0.0
    %494 = vmatprep.subr.mxu0 0.0
    %495 = vmatpush2.msra.mxu0 0.0
    %496 = vmatprep.subr.mxu0 0.0
    %497 = vmatpush2.msra.mxu0 0.0
    %498 = vmatprep.subr.mxu0 0.0
    %499 = vmatpush2.msra.mxu0 0.0
    %500 = vmatprep.subr.mxu0 0.0
    %501 = vmatpush2.msra.mxu0 0.0
    %502 = vmatprep.subr.mxu0 0.0
    %503 = vmatpush2.msra.mxu0 0.0
    %504 = vmatprep.mubr.f32.mxu0 0.0
    %505 = vmatmul.mubr.f32.gmra.mxu0 %v438
    %v506 = vpop.f32.mrf.mxu0
    %v507 = vadd.f32 0.0, %v506
    %v508 = vpop.f32.mrf.mxu0
    %509 = vdwg.mxu0
    %v510 = vadd.f32 %v437, %v507
    %v511 = vxor.u32 %v510, 2147483648
    %v512 = vmul.f32 %v511, 1.442695
    %v513 = vpow.pop %v512
    %v514 = vadd.f32 %v513, 1.0
    %v515 = vrcp.pop %v514
    %v516 = vmul.f32 1.0, %v515
    %v517 = vmul.f32 %v516, 2.0
    %v518 = vsub.f32 %v517, 1.0
    %v519 = vmul.f32 %v516, %v423
    %521 = vrot.lane.b32.xlu0 %v518, 64
    %v522 = vpop.permute.xlu0 %521
    %v524 = vmul.f32 %v516, %v522
    %526 = vrot.lane.b32.xlu0 %v524, 32
    %v527 = vpop.permute.xlu0 %526
    %v529 = vadd.f32 %v519, %v527
    %v530 = vtanh.pop %v529
    %532 = vrot.lane.b32.xlu0 %v530, 64
    %v533 = vpop.permute.xlu0 %532
    %v535 = vmul.f32 %v516, %v533
    %537 = vrot.lane.b32.xlu0 %v535, 32
    %v538 = vpop.permute.xlu0 %537
    %s540 = scalar_lea.vmem [#allocation3], 16
    %541 = vst.msk [vmem:[%s540] sm:$0xff] %vm225, %v538
    %s542 = scalar_lea.vmem [#allocation2], 24
    %v543 = vld [vmem:[%s542] sm:$0xff]
    %v544 = vsel %vm225, %v538, 0
    %546 = vmatprep.subr.mxu0 0.0
    %547 = vmatpush1.msra.mxu0 0.0
    %548 = vmatprep.subr.mxu0 0.0
    %549 = vmatpush1.msra.mxu0 0.0
    %550 = vmatprep.subr.mxu0 0.0
    %551 = vmatpush1.msra.mxu0 0.0
    %552 = vmatprep.subr.mxu0 0.0
    %553 = vmatpush1.msra.mxu0 0.0
    %554 = vmatprep.subr.mxu0 0.0
    %555 = vmatpush1.msra.mxu0 0.0
    %556 = vmatprep.subr.mxu0 0.0
    %557 = vmatpush1.msra.mxu0 0.0
    %558 = vmatprep.subr.mxu0 0.0
    %559 = vmatpush1.msra.mxu0 0.0
    %560 = vmatprep.subr.mxu0 0.0
    %561 = vmatpush1.msra.mxu0 0.0
    %562 = vmatprep.subr.mxu0 0.0
    %563 = vmatpush1.msra.mxu0 0.0
    %564 = vmatprep.subr.mxu0 0.0
    %565 = vmatpush1.msra.mxu0 0.0
    %566 = vmatprep.subr.mxu0 0.0
    %567 = vmatpush1.msra.mxu0 0.0
    %568 = vmatprep.subr.mxu0 0.0
    %569 = vmatpush1.msra.mxu0 0.0
    %570 = vmatprep.subr.mxu0 0.0
    %571 = vmatpush1.msra.mxu0 %v223
    %572 = vmatprep.subr.mxu0 0.0
    %573 = vmatpush1.msra.mxu0 %v222
    %574 = vmatprep.subr.mxu0 0.0
    %575 = vmatpush1.msra.mxu0 %v221
    %576 = vmatprep.subr.mxu0 0.0
    %577 = vmatpush1.msra.mxu0 %v220
    %578 = vmatprep.subr.mxu0 0.0
    %579 = vmatpush2.msra.mxu0 0.0
    %580 = vmatprep.subr.mxu0 0.0
    %581 = vmatpush2.msra.mxu0 0.0
    %582 = vmatprep.subr.mxu0 0.0
    %583 = vmatpush2.msra.mxu0 0.0
    %584 = vmatprep.subr.mxu0 0.0
    %585 = vmatpush2.msra.mxu0 0.0
    %586 = vmatprep.subr.mxu0 0.0
    %587 = vmatpush2.msra.mxu0 0.0
    %588 = vmatprep.subr.mxu0 0.0
    %589 = vmatpush2.msra.mxu0 0.0
    %590 = vmatprep.subr.mxu0 0.0
    %591 = vmatpush2.msra.mxu0 0.0
    %592 = vmatprep.subr.mxu0 0.0
    %593 = vmatpush2.msra.mxu0 0.0
    %594 = vmatprep.subr.mxu0 0.0
    %595 = vmatpush2.msra.mxu0 0.0
    %596 = vmatprep.subr.mxu0 0.0
    %597 = vmatpush2.msra.mxu0 0.0
    %598 = vmatprep.subr.mxu0 0.0
    %599 = vmatpush2.msra.mxu0 0.0
    %600 = vmatprep.subr.mxu0 0.0
    %601 = vmatpush2.msra.mxu0 0.0
    %602 = vmatprep.subr.mxu0 0.0
    %603 = vmatpush2.msra.mxu0 0.0
    %604 = vmatprep.subr.mxu0 0.0
    %605 = vmatpush2.msra.mxu0 0.0
    %606 = vmatprep.subr.mxu0 0.0
    %607 = vmatpush2.msra.mxu0 0.0
    %608 = vmatprep.subr.mxu0 0.0
    %609 = vmatpush2.msra.mxu0 0.0
    %610 = vmatprep.mubr.f32.mxu0 0.0
    %611 = vmatmul.mubr.f32.gmra.mxu0 %v544
    %v612 = vpop.f32.mrf.mxu0
    %v613 = vadd.f32 0.0, %v612
    %v614 = vpop.f32.mrf.mxu0
    %615 = vdwg.mxu0
    %v616 = vadd.f32 %v543, %v613
    %v617 = vxor.u32 %v616, 2147483648
    %v618 = vmul.f32 %v617, 1.442695
    %v619 = vpow.pop %v618
    %v620 = vadd.f32 %v619, 1.0
    %v621 = vrcp.pop %v620
    %v622 = vmul.f32 1.0, %v621
    %v623 = vmul.f32 %v622, 2.0
    %v624 = vsub.f32 %v623, 1.0
    %v625 = vmul.f32 %v622, %v529
    %627 = vrot.lane.b32.xlu0 %v624, 64
    %v628 = vpop.permute.xlu0 %627
    %v630 = vmul.f32 %v622, %v628
    %632 = vrot.lane.b32.xlu0 %v630, 32
    %v633 = vpop.permute.xlu0 %632
    %v635 = vadd.f32 %v625, %v633
    %v636 = vtanh.pop %v635
    %638 = vrot.lane.b32.xlu0 %v636, 64
    %v639 = vpop.permute.xlu0 %638
    %v641 = vmul.f32 %v622, %v639
    %643 = vrot.lane.b32.xlu0 %v641, 32
    %v644 = vpop.permute.xlu0 %643
    %s646 = scalar_lea.vmem [#allocation3], 24
    %647 = vst.msk [vmem:[%s646] sm:$0xff] %vm225, %v644
    %s648 = scalar_lea.vmem [#allocation2], 32
    %v649 = vld [vmem:[%s648] sm:$0xff]
    %v650 = vsel %vm225, %v644, 0
    %652 = vmatprep.subr.mxu0 0.0
    %653 = vmatpush1.msra.mxu0 0.0
    %654 = vmatprep.subr.mxu0 0.0
    %655 = vmatpush1.msra.mxu0 0.0
    %656 = vmatprep.subr.mxu0 0.0
    %657 = vmatpush1.msra.mxu0 0.0
    %658 = vmatprep.subr.mxu0 0.0
    %659 = vmatpush1.msra.mxu0 0.0
    %660 = vmatprep.subr.mxu0 0.0
    %661 = vmatpush1.msra.mxu0 0.0
    %662 = vmatprep.subr.mxu0 0.0
    %663 = vmatpush1.msra.mxu0 0.0
    %664 = vmatprep.subr.mxu0 0.0
    %665 = vmatpush1.msra.mxu0 0.0
    %666 = vmatprep.subr.mxu0 0.0
    %667 = vmatpush1.msra.mxu0 0.0
    %668 = vmatprep.subr.mxu0 0.0
    %669 = vmatpush1.msra.mxu0 0.0
    %670 = vmatprep.subr.mxu0 0.0
    %671 = vmatpush1.msra.mxu0 0.0
    %672 = vmatprep.subr.mxu0 0.0
    %673 = vmatpush1.msra.mxu0 0.0
    %674 = vmatprep.subr.mxu0 0.0
    %675 = vmatpush1.msra.mxu0 0.0
    %676 = vmatprep.subr.mxu0 0.0
    %677 = vmatpush1.msra.mxu0 %v223
    %678 = vmatprep.subr.mxu0 0.0
    %679 = vmatpush1.msra.mxu0 %v222
    %680 = vmatprep.subr.mxu0 0.0
    %681 = vmatpush1.msra.mxu0 %v221
    %682 = vmatprep.subr.mxu0 0.0
    %683 = vmatpush1.msra.mxu0 %v220
    %684 = vmatprep.subr.mxu0 0.0
    %685 = vmatpush2.msra.mxu0 0.0
    %686 = vmatprep.subr.mxu0 0.0
    %687 = vmatpush2.msra.mxu0 0.0
    %688 = vmatprep.subr.mxu0 0.0
    %689 = vmatpush2.msra.mxu0 0.0
    %690 = vmatprep.subr.mxu0 0.0
    %691 = vmatpush2.msra.mxu0 0.0
    %692 = vmatprep.subr.mxu0 0.0
    %693 = vmatpush2.msra.mxu0 0.0
    %694 = vmatprep.subr.mxu0 0.0
    %695 = vmatpush2.msra.mxu0 0.0
    %696 = vmatprep.subr.mxu0 0.0
    %697 = vmatpush2.msra.mxu0 0.0
    %698 = vmatprep.subr.mxu0 0.0
    %699 = vmatpush2.msra.mxu0 0.0
    %700 = vmatprep.subr.mxu0 0.0
    %701 = vmatpush2.msra.mxu0 0.0
    %702 = vmatprep.subr.mxu0 0.0
    %703 = vmatpush2.msra.mxu0 0.0
    %704 = vmatprep.subr.mxu0 0.0
    %705 = vmatpush2.msra.mxu0 0.0
    %706 = vmatprep.subr.mxu0 0.0
    %707 = vmatpush2.msra.mxu0 0.0
    %708 = vmatprep.subr.mxu0 0.0
    %709 = vmatpush2.msra.mxu0 0.0
    %710 = vmatprep.subr.mxu0 0.0
    %711 = vmatpush2.msra.mxu0 0.0
    %712 = vmatprep.subr.mxu0 0.0
    %713 = vmatpush2.msra.mxu0 0.0
    %714 = vmatprep.subr.mxu0 0.0
    %715 = vmatpush2.msra.mxu0 0.0
    %716 = vmatprep.mubr.f32.mxu0 0.0
    %717 = vmatmul.mubr.f32.gmra.mxu0 %v650
    %v718 = vpop.f32.mrf.mxu0
    %v719 = vadd.f32 0.0, %v718
    %v720 = vpop.f32.mrf.mxu0
    %721 = vdwg.mxu0
    %v722 = vadd.f32 %v649, %v719
    %v723 = vxor.u32 %v722, 2147483648
    %v724 = vmul.f32 %v723, 1.442695
    %v725 = vpow.pop %v724
    %v726 = vadd.f32 %v725, 1.0
    %v727 = vrcp.pop %v726
    %v728 = vmul.f32 1.0, %v727
    %v729 = vmul.f32 %v728, 2.0
    %v730 = vsub.f32 %v729, 1.0
    %v731 = vmul.f32 %v728, %v635
    %733 = vrot.lane.b32.xlu0 %v730, 64
    %v734 = vpop.permute.xlu0 %733
    %v736 = vmul.f32 %v728, %v734
    %738 = vrot.lane.b32.xlu0 %v736, 32
    %v739 = vpop.permute.xlu0 %738
    %v741 = vadd.f32 %v731, %v739
    %v742 = vtanh.pop %v741
    %744 = vrot.lane.b32.xlu0 %v742, 64
    %v745 = vpop.permute.xlu0 %744
    %v747 = vmul.f32 %v728, %v745
    %749 = vrot.lane.b32.xlu0 %v747, 32
    %v750 = vpop.permute.xlu0 %749
    %s752 = scalar_lea.vmem [#allocation3], 32
    %753 = vst.msk [vmem:[%s752] sm:$0xff] %vm225, %v750
    %s754 = scalar_lea.vmem [#allocation2], 40
    %v755 = vld [vmem:[%s754] sm:$0xff]
    %v756 = vsel %vm225, %v750, 0
    %758 = vmatprep.subr.mxu0 0.0
    %759 = vmatpush1.msra.mxu0 0.0
    %760 = vmatprep.subr.mxu0 0.0
    %761 = vmatpush1.msra.mxu0 0.0
    %762 = vmatprep.subr.mxu0 0.0
    %763 = vmatpush1.msra.mxu0 0.0
    %764 = vmatprep.subr.mxu0 0.0
    %765 = vmatpush1.msra.mxu0 0.0
    %766 = vmatprep.subr.mxu0 0.0
    %767 = vmatpush1.msra.mxu0 0.0
    %768 = vmatprep.subr.mxu0 0.0
    %769 = vmatpush1.msra.mxu0 0.0
    %770 = vmatprep.subr.mxu0 0.0
    %771 = vmatpush1.msra.mxu0 0.0
    %772 = vmatprep.subr.mxu0 0.0
    %773 = vmatpush1.msra.mxu0 0.0
    %774 = vmatprep.subr.mxu0 0.0
    %775 = vmatpush1.msra.mxu0 0.0
    %776 = vmatprep.subr.mxu0 0.0
    %777 = vmatpush1.msra.mxu0 0.0
    %778 = vmatprep.subr.mxu0 0.0
    %779 = vmatpush1.msra.mxu0 0.0
    %780 = vmatprep.subr.mxu0 0.0
    %781 = vmatpush1.msra.mxu0 0.0
    %782 = vmatprep.subr.mxu0 0.0
    %783 = vmatpush1.msra.mxu0 %v223
    %784 = vmatprep.subr.mxu0 0.0
    %785 = vmatpush1.msra.mxu0 %v222
    %786 = vmatprep.subr.mxu0 0.0
    %787 = vmatpush1.msra.mxu0 %v221
    %788 = vmatprep.subr.mxu0 0.0
    %789 = vmatpush1.msra.mxu0 %v220
    %790 = vmatprep.subr.mxu0 0.0
    %791 = vmatpush2.msra.mxu0 0.0
    %792 = vmatprep.subr.mxu0 0.0
    %793 = vmatpush2.msra.mxu0 0.0
    %794 = vmatprep.subr.mxu0 0.0
    %795 = vmatpush2.msra.mxu0 0.0
    %796 = vmatprep.subr.mxu0 0.0
    %797 = vmatpush2.msra.mxu0 0.0
    %798 = vmatprep.subr.mxu0 0.0
    %799 = vmatpush2.msra.mxu0 0.0
    %800 = vmatprep.subr.mxu0 0.0
    %801 = vmatpush2.msra.mxu0 0.0
    %802 = vmatprep.subr.mxu0 0.0
    %803 = vmatpush2.msra.mxu0 0.0
    %804 = vmatprep.subr.mxu0 0.0
    %805 = vmatpush2.msra.mxu0 0.0
    %806 = vmatprep.subr.mxu0 0.0
    %807 = vmatpush2.msra.mxu0 0.0
    %808 = vmatprep.subr.mxu0 0.0
    %809 = vmatpush2.msra.mxu0 0.0
    %810 = vmatprep.subr.mxu0 0.0
    %811 = vmatpush2.msra.mxu0 0.0
    %812 = vmatprep.subr.mxu0 0.0
    %813 = vmatpush2.msra.mxu0 0.0
    %814 = vmatprep.subr.mxu0 0.0
    %815 = vmatpush2.msra.mxu0 0.0
    %816 = vmatprep.subr.mxu0 0.0
    %817 = vmatpush2.msra.mxu0 0.0
    %818 = vmatprep.subr.mxu0 0.0
    %819 = vmatpush2.msra.mxu0 0.0
    %820 = vmatprep.subr.mxu0 0.0
    %821 = vmatpush2.msra.mxu0 0.0
    %822 = vmatprep.mubr.f32.mxu0 0.0
    %823 = vmatmul.mubr.f32.gmra.mxu0 %v756
    %v824 = vpop.f32.mrf.mxu0
    %v825 = vadd.f32 0.0, %v824
    %v826 = vpop.f32.mrf.mxu0
    %827 = vdwg.mxu0
    %v828 = vadd.f32 %v755, %v825
    %v829 = vxor.u32 %v828, 2147483648
    %v830 = vmul.f32 %v829, 1.442695
    %v831 = vpow.pop %v830
    %v832 = vadd.f32 %v831, 1.0
    %v833 = vrcp.pop %v832
    %v834 = vmul.f32 1.0, %v833
    %v835 = vmul.f32 %v834, 2.0
    %v836 = vsub.f32 %v835, 1.0
    %v837 = vmul.f32 %v834, %v741
    %839 = vrot.lane.b32.xlu0 %v836, 64
    %v840 = vpop.permute.xlu0 %839
    %v842 = vmul.f32 %v834, %v840
    %844 = vrot.lane.b32.xlu0 %v842, 32
    %v845 = vpop.permute.xlu0 %844
    %v847 = vadd.f32 %v837, %v845
    %v848 = vtanh.pop %v847
    %850 = vrot.lane.b32.xlu0 %v848, 64
    %v851 = vpop.permute.xlu0 %850
    %v853 = vmul.f32 %v834, %v851
    %855 = vrot.lane.b32.xlu0 %v853, 32
    %v856 = vpop.permute.xlu0 %855
    %s858 = scalar_lea.vmem [#allocation3], 40
    %859 = vst.msk [vmem:[%s858] sm:$0xff] %vm225, %v856
    %s860 = scalar_lea.vmem [#allocation2], 48
    %v861 = vld [vmem:[%s860] sm:$0xff]
    %v862 = vsel %vm225, %v856, 0
    %864 = vmatprep.subr.mxu0 0.0
    %865 = vmatpush1.msra.mxu0 0.0
    %866 = vmatprep.subr.mxu0 0.0
    %867 = vmatpush1.msra.mxu0 0.0
    %868 = vmatprep.subr.mxu0 0.0
    %869 = vmatpush1.msra.mxu0 0.0
    %870 = vmatprep.subr.mxu0 0.0
    %871 = vmatpush1.msra.mxu0 0.0
    %872 = vmatprep.subr.mxu0 0.0
    %873 = vmatpush1.msra.mxu0 0.0
    %874 = vmatprep.subr.mxu0 0.0
    %875 = vmatpush1.msra.mxu0 0.0
    %876 = vmatprep.subr.mxu0 0.0
    %877 = vmatpush1.msra.mxu0 0.0
    %878 = vmatprep.subr.mxu0 0.0
    %879 = vmatpush1.msra.mxu0 0.0
    %880 = vmatprep.subr.mxu0 0.0
    %881 = vmatpush1.msra.mxu0 0.0
    %882 = vmatprep.subr.mxu0 0.0
    %883 = vmatpush1.msra.mxu0 0.0
    %884 = vmatprep.subr.mxu0 0.0
    %885 = vmatpush1.msra.mxu0 0.0
    %886 = vmatprep.subr.mxu0 0.0
    %887 = vmatpush1.msra.mxu0 0.0
    %888 = vmatprep.subr.mxu0 0.0
    %889 = vmatpush1.msra.mxu0 %v223
    %890 = vmatprep.subr.mxu0 0.0
    %891 = vmatpush1.msra.mxu0 %v222
    %892 = vmatprep.subr.mxu0 0.0
    %893 = vmatpush1.msra.mxu0 %v221
    %894 = vmatprep.subr.mxu0 0.0
    %895 = vmatpush1.msra.mxu0 %v220
    %896 = vmatprep.subr.mxu0 0.0
    %897 = vmatpush2.msra.mxu0 0.0
    %898 = vmatprep.subr.mxu0 0.0
    %899 = vmatpush2.msra.mxu0 0.0
    %900 = vmatprep.subr.mxu0 0.0
    %901 = vmatpush2.msra.mxu0 0.0
    %902 = vmatprep.subr.mxu0 0.0
    %903 = vmatpush2.msra.mxu0 0.0
    %904 = vmatprep.subr.mxu0 0.0
    %905 = vmatpush2.msra.mxu0 0.0
    %906 = vmatprep.subr.mxu0 0.0
    %907 = vmatpush2.msra.mxu0 0.0
    %908 = vmatprep.subr.mxu0 0.0
    %909 = vmatpush2.msra.mxu0 0.0
    %910 = vmatprep.subr.mxu0 0.0
    %911 = vmatpush2.msra.mxu0 0.0
    %912 = vmatprep.subr.mxu0 0.0
    %913 = vmatpush2.msra.mxu0 0.0
    %914 = vmatprep.subr.mxu0 0.0
    %915 = vmatpush2.msra.mxu0 0.0
    %916 = vmatprep.subr.mxu0 0.0
    %917 = vmatpush2.msra.mxu0 0.0
    %918 = vmatprep.subr.mxu0 0.0
    %919 = vmatpush2.msra.mxu0 0.0
    %920 = vmatprep.subr.mxu0 0.0
    %921 = vmatpush2.msra.mxu0 0.0
    %922 = vmatprep.subr.mxu0 0.0
    %923 = vmatpush2.msra.mxu0 0.0
    %924 = vmatprep.subr.mxu0 0.0
    %925 = vmatpush2.msra.mxu0 0.0
    %926 = vmatprep.subr.mxu0 0.0
    %927 = vmatpush2.msra.mxu0 0.0
    %928 = vmatprep.mubr.f32.mxu0 0.0
    %929 = vmatmul.mubr.f32.gmra.mxu0 %v862
    %v930 = vpop.f32.mrf.mxu0
    %v931 = vadd.f32 0.0, %v930
    %v932 = vpop.f32.mrf.mxu0
    %933 = vdwg.mxu0
    %v934 = vadd.f32 %v861, %v931
    %v935 = vxor.u32 %v934, 2147483648
    %v936 = vmul.f32 %v935, 1.442695
    %v937 = vpow.pop %v936
    %v938 = vadd.f32 %v937, 1.0
    %v939 = vrcp.pop %v938
    %v940 = vmul.f32 1.0, %v939
    %v941 = vmul.f32 %v940, 2.0
    %v942 = vsub.f32 %v941, 1.0
    %v943 = vmul.f32 %v940, %v847
    %945 = vrot.lane.b32.xlu0 %v942, 64
    %v946 = vpop.permute.xlu0 %945
    %v948 = vmul.f32 %v940, %v946
    %950 = vrot.lane.b32.xlu0 %v948, 32
    %v951 = vpop.permute.xlu0 %950
    %v953 = vadd.f32 %v943, %v951
    %v954 = vtanh.pop %v953
    %956 = vrot.lane.b32.xlu0 %v954, 64
    %v957 = vpop.permute.xlu0 %956
    %v959 = vmul.f32 %v940, %v957
    %961 = vrot.lane.b32.xlu0 %v959, 32
    %v962 = vpop.permute.xlu0 %961
    %s964 = scalar_lea.vmem [#allocation3], 48
    %965 = vst.msk [vmem:[%s964] sm:$0xff] %vm225, %v962
    %s966 = scalar_lea.vmem [#allocation2], 56
    %v967 = vld [vmem:[%s966] sm:$0xff]
    %v968 = vsel %vm225, %v962, 0
    %970 = vmatprep.subr.mxu0 0.0
    %971 = vmatpush1.msra.mxu0 0.0
    %972 = vmatprep.subr.mxu0 0.0
    %973 = vmatpush1.msra.mxu0 0.0
    %974 = vmatprep.subr.mxu0 0.0
    %975 = vmatpush1.msra.mxu0 0.0
    %976 = vmatprep.subr.mxu0 0.0
    %977 = vmatpush1.msra.mxu0 0.0
    %978 = vmatprep.subr.mxu0 0.0
    %979 = vmatpush1.msra.mxu0 0.0
    %980 = vmatprep.subr.mxu0 0.0
    %981 = vmatpush1.msra.mxu0 0.0
    %982 = vmatprep.subr.mxu0 0.0
    %983 = vmatpush1.msra.mxu0 0.0
    %984 = vmatprep.subr.mxu0 0.0
    %985 = vmatpush1.msra.mxu0 0.0
    %986 = vmatprep.subr.mxu0 0.0
    %987 = vmatpush1.msra.mxu0 0.0
    %988 = vmatprep.subr.mxu0 0.0
    %989 = vmatpush1.msra.mxu0 0.0
    %990 = vmatprep.subr.mxu0 0.0
    %991 = vmatpush1.msra.mxu0 0.0
    %992 = vmatprep.subr.mxu0 0.0
    %993 = vmatpush1.msra.mxu0 0.0
    %994 = vmatprep.subr.mxu0 0.0
    %995 = vmatpush1.msra.mxu0 %v223
    %996 = vmatprep.subr.mxu0 0.0
    %997 = vmatpush1.msra.mxu0 %v222
    %998 = vmatprep.subr.mxu0 0.0
    %999 = vmatpush1.msra.mxu0 %v221
    %1000 = vmatprep.subr.mxu0 0.0
    %1001 = vmatpush1.msra.mxu0 %v220
    %1002 = vmatprep.subr.mxu0 0.0
    %1003 = vmatpush2.msra.mxu0 0.0
    %1004 = vmatprep.subr.mxu0 0.0
    %1005 = vmatpush2.msra.mxu0 0.0
    %1006 = vmatprep.subr.mxu0 0.0
    %1007 = vmatpush2.msra.mxu0 0.0
    %1008 = vmatprep.subr.mxu0 0.0
    %1009 = vmatpush2.msra.mxu0 0.0
    %1010 = vmatprep.subr.mxu0 0.0
    %1011 = vmatpush2.msra.mxu0 0.0
    %1012 = vmatprep.subr.mxu0 0.0
    %1013 = vmatpush2.msra.mxu0 0.0
    %1014 = vmatprep.subr.mxu0 0.0
    %1015 = vmatpush2.msra.mxu0 0.0
    %1016 = vmatprep.subr.mxu0 0.0
    %1017 = vmatpush2.msra.mxu0 0.0
    %1018 = vmatprep.subr.mxu0 0.0
    %1019 = vmatpush2.msra.mxu0 0.0
    %1020 = vmatprep.subr.mxu0 0.0
    %1021 = vmatpush2.msra.mxu0 0.0
    %1022 = vmatprep.subr.mxu0 0.0
    %1023 = vmatpush2.msra.mxu0 0.0
    %1024 = vmatprep.subr.mxu0 0.0
    %1025 = vmatpush2.msra.mxu0 0.0
    %1026 = vmatprep.subr.mxu0 0.0
    %1027 = vmatpush2.msra.mxu0 0.0
    %1028 = vmatprep.subr.mxu0 0.0
    %1029 = vmatpush2.msra.mxu0 0.0
    %1030 = vmatprep.subr.mxu0 0.0
    %1031 = vmatpush2.msra.mxu0 0.0
    %1032 = vmatprep.subr.mxu0 0.0
    %1033 = vmatpush2.msra.mxu0 0.0
    %1034 = vmatprep.mubr.f32.mxu0 0.0
    %1035 = vmatmul.mubr.f32.gmra.mxu0 %v968
    %v1036 = vpop.f32.mrf.mxu0
    %v1037 = vadd.f32 0.0, %v1036
    %v1038 = vpop.f32.mrf.mxu0
    %1039 = vdwg.mxu0
    %v1040 = vadd.f32 %v967, %v1037
    %v1041 = vxor.u32 %v1040, 2147483648
    %v1042 = vmul.f32 %v1041, 1.442695
    %v1043 = vpow.pop %v1042
    %v1044 = vadd.f32 %v1043, 1.0
    %v1045 = vrcp.pop %v1044
    %v1046 = vmul.f32 1.0, %v1045
    %v1047 = vmul.f32 %v1046, 2.0
    %v1048 = vsub.f32 %v1047, 1.0
    %v1049 = vmul.f32 %v1046, %v953
    %1051 = vrot.lane.b32.xlu0 %v1048, 64
    %v1052 = vpop.permute.xlu0 %1051
    %v1054 = vmul.f32 %v1046, %v1052
    %1056 = vrot.lane.b32.xlu0 %v1054, 32
    %v1057 = vpop.permute.xlu0 %1056
    %v1059 = vadd.f32 %v1049, %v1057
    %v1060 = vtanh.pop %v1059
    %1062 = vrot.lane.b32.xlu0 %v1060, 64
    %v1063 = vpop.permute.xlu0 %1062
    %v1065 = vmul.f32 %v1046, %v1063
    %1067 = vrot.lane.b32.xlu0 %v1065, 32
    %v1068 = vpop.permute.xlu0 %1067
    %s1070 = scalar_lea.vmem [#allocation3], 56
    %1071 = vst.msk [vmem:[%s1070] sm:$0xff] %vm225, %v1068
    %v1072 = vld [vmem:[#allocation3] sm:$0xff]
    %v1073 = vld [vmem:[#allocation3 + $0x8] sm:$0xff]
    %v1074 = vld [vmem:[#allocation3 + $0x10] sm:$0xff]
    %v1075 = vld [vmem:[#allocation3 + $0x18] sm:$0xff]
    %v1076 = vld [vmem:[#allocation3 + $0x20] sm:$0xff]
    %v1077 = vld [vmem:[#allocation3 + $0x28] sm:$0xff]
    %v1078 = vld [vmem:[#allocation3 + $0x30] sm:$0xff]
    %v1079 = vld [vmem:[#allocation3 + $0x38] sm:$0xff]
    %v1080 = vld [vmem:[#allocation4] sm:$0xff]
    %v1081 = vld [vmem:[#allocation4 + $0x8] sm:$0xff]
    %v1082 = vld [vmem:[#allocation4 + $0x10] sm:$0xff]
    %v1083 = vld [vmem:[#allocation4 + $0x18] sm:$0xff]
    %v1084 = vld [vmem:[%s5] sm:$0x1]
    %v1086 = vlaneseq
    %v1087 = vshrl.u32 %v1086, 7
    %v1088 = vsub.s32 0, %v1087
    %v1089 = vrot.slane %v1084, %v1088
    %v1092 = vsel %vm225, %v1072, 0
    %v1095 = vsel %vm225, %v1073, 0
    %v1098 = vsel %vm225, %v1074, 0
    %v1101 = vsel %vm225, %v1075, 0
    %v1104 = vsel %vm225, %v1076, 0
    %v1107 = vsel %vm225, %v1077, 0
    %v1110 = vsel %vm225, %v1078, 0
    %v1113 = vsel %vm225, %v1079, 0
    %1115 = vmatprep.subr.mxu0 0.0
    %1116 = vmatpush1.msra.mxu0 0.0
    %1117 = vmatprep.subr.mxu0 0.0
    %1118 = vmatpush1.msra.mxu0 0.0
    %1119 = vmatprep.subr.mxu0 0.0
    %1120 = vmatpush1.msra.mxu0 0.0
    %1121 = vmatprep.subr.mxu0 0.0
    %1122 = vmatpush1.msra.mxu0 0.0
    %1123 = vmatprep.subr.mxu0 0.0
    %1124 = vmatpush1.msra.mxu0 0.0
    %1125 = vmatprep.subr.mxu0 0.0
    %1126 = vmatpush1.msra.mxu0 0.0
    %1127 = vmatprep.subr.mxu0 0.0
    %1128 = vmatpush1.msra.mxu0 0.0
    %1129 = vmatprep.subr.mxu0 0.0
    %1130 = vmatpush1.msra.mxu0 0.0
    %1131 = vmatprep.subr.mxu0 0.0
    %1132 = vmatpush1.msra.mxu0 0.0
    %1133 = vmatprep.subr.mxu0 0.0
    %1134 = vmatpush1.msra.mxu0 0.0
    %1135 = vmatprep.subr.mxu0 0.0
    %1136 = vmatpush1.msra.mxu0 0.0
    %1137 = vmatprep.subr.mxu0 0.0
    %1138 = vmatpush1.msra.mxu0 0.0
    %1139 = vmatprep.subr.mxu0 0.0
    %1140 = vmatpush1.msra.mxu0 %v1083
    %1141 = vmatprep.subr.mxu0 0.0
    %1142 = vmatpush1.msra.mxu0 %v1082
    %1143 = vmatprep.subr.mxu0 0.0
    %1144 = vmatpush1.msra.mxu0 %v1081
    %1145 = vmatprep.subr.mxu0 0.0
    %1146 = vmatpush1.msra.mxu0 %v1080
    %1147 = vmatprep.subr.mxu0 0.0
    %1148 = vmatpush2.msra.mxu0 0.0
    %1149 = vmatprep.subr.mxu0 0.0
    %1150 = vmatpush2.msra.mxu0 0.0
    %1151 = vmatprep.subr.mxu0 0.0
    %1152 = vmatpush2.msra.mxu0 0.0
    %1153 = vmatprep.subr.mxu0 0.0
    %1154 = vmatpush2.msra.mxu0 0.0
    %1155 = vmatprep.subr.mxu0 0.0
    %1156 = vmatpush2.msra.mxu0 0.0
    %1157 = vmatprep.subr.mxu0 0.0
    %1158 = vmatpush2.msra.mxu0 0.0
    %1159 = vmatprep.subr.mxu0 0.0
    %1160 = vmatpush2.msra.mxu0 0.0
    %1161 = vmatprep.subr.mxu0 0.0
    %1162 = vmatpush2.msra.mxu0 0.0
    %1163 = vmatprep.subr.mxu0 0.0
    %1164 = vmatpush2.msra.mxu0 0.0
    %1165 = vmatprep.subr.mxu0 0.0
    %1166 = vmatpush2.msra.mxu0 0.0
    %1167 = vmatprep.subr.mxu0 0.0
    %1168 = vmatpush2.msra.mxu0 0.0
    %1169 = vmatprep.subr.mxu0 0.0
    %1170 = vmatpush2.msra.mxu0 0.0
    %1171 = vmatprep.subr.mxu0 0.0
    %1172 = vmatpush2.msra.mxu0 0.0
    %1173 = vmatprep.subr.mxu0 0.0
    %1174 = vmatpush2.msra.mxu0 0.0
    %1175 = vmatprep.subr.mxu0 0.0
    %1176 = vmatpush2.msra.mxu0 0.0
    %1177 = vmatprep.subr.mxu0 0.0
    %1178 = vmatpush2.msra.mxu0 0.0
    %1179 = vmatprep.mubr.f32.mxu0 0.0
    %1180 = vmatmul.mubr.f32.gmra.mxu0 %v1092
    %v1181 = vpop.f32.mrf.mxu0
    %v1182 = vadd.f32 %v1089, %v1181
    %v1183 = vpop.f32.mrf.mxu0
    %1184 = vmatprep.mubr.f32.mxu0 0.0
    %1185 = vmatmul.mubr.f32.gmra.mxu0 %v1095
    %v1186 = vpop.f32.mrf.mxu0
    %v1187 = vadd.f32 %v1089, %v1186
    %v1188 = vpop.f32.mrf.mxu0
    %1189 = vmatprep.mubr.f32.mxu0 0.0
    %1190 = vmatmul.mubr.f32.gmra.mxu0 %v1098
    %v1191 = vpop.f32.mrf.mxu0
    %v1192 = vadd.f32 %v1089, %v1191
    %v1193 = vpop.f32.mrf.mxu0
    %1194 = vmatprep.mubr.f32.mxu0 0.0
    %1195 = vmatmul.mubr.f32.gmra.mxu0 %v1101
    %v1196 = vpop.f32.mrf.mxu0
    %v1197 = vadd.f32 %v1089, %v1196
    %v1198 = vpop.f32.mrf.mxu0
    %1199 = vmatprep.mubr.f32.mxu0 0.0
    %1200 = vmatmul.mubr.f32.gmra.mxu0 %v1104
    %v1201 = vpop.f32.mrf.mxu0
    %v1202 = vadd.f32 %v1089, %v1201
    %v1203 = vpop.f32.mrf.mxu0
    %1204 = vmatprep.mubr.f32.mxu0 0.0
    %1205 = vmatmul.mubr.f32.gmra.mxu0 %v1107
    %v1206 = vpop.f32.mrf.mxu0
    %v1207 = vadd.f32 %v1089, %v1206
    %v1208 = vpop.f32.mrf.mxu0
    %1209 = vmatprep.mubr.f32.mxu0 0.0
    %1210 = vmatmul.mubr.f32.gmra.mxu0 %v1110
    %v1211 = vpop.f32.mrf.mxu0
    %v1212 = vadd.f32 %v1089, %v1211
    %v1213 = vpop.f32.mrf.mxu0
    %1214 = vmatprep.mubr.f32.mxu0 0.0
    %1215 = vmatmul.mubr.f32.gmra.mxu0 %v1113
    %v1216 = vpop.f32.mrf.mxu0
    %v1217 = vadd.f32 %v1089, %v1216
    %v1218 = vpop.f32.mrf.mxu0
    %1219 = vdwg.mxu0
    %1220 = vst [vmem:[#allocation2] sm:$0xff] %v1182
    %1221 = vst [vmem:[#allocation2 + $0x8] sm:$0xff] %v1187
    %1222 = vst [vmem:[#allocation2 + $0x10] sm:$0xff] %v1192
    %1223 = vst [vmem:[#allocation2 + $0x18] sm:$0xff] %v1197
    %1224 = vst [vmem:[#allocation2 + $0x20] sm:$0xff] %v1202
    %1225 = vst [vmem:[#allocation2 + $0x28] sm:$0xff] %v1207
    %1226 = vst [vmem:[#allocation2 + $0x30] sm:$0xff] %v1212
    %1227 = vst [vmem:[#allocation2 + $0x38] sm:$0xff] %v1217
    %v1228 = vld [vmem:[#allocation6] sm:$0xff]
    %v1229 = vld [vmem:[#allocation6 + $0x8] sm:$0xff]
    %v1230 = vld [vmem:[#allocation6 + $0x10] sm:$0xff]
    %v1231 = vld [vmem:[#allocation6 + $0x18] sm:$0xff]
    %v1232 = vld [vmem:[#allocation2] sm:$0xff]
    %1233 = vmatprep.subr.mxu0 0.0
    %1234 = vmatpush1.msra.mxu0 0.0
    %1235 = vmatprep.subr.mxu0 0.0
    %1236 = vmatpush1.msra.mxu0 0.0
    %1237 = vmatprep.subr.mxu0 0.0
    %1238 = vmatpush1.msra.mxu0 0.0
    %1239 = vmatprep.subr.mxu0 0.0
    %1240 = vmatpush1.msra.mxu0 0.0
    %1241 = vmatprep.subr.mxu0 0.0
    %1242 = vmatpush1.msra.mxu0 0.0
    %1243 = vmatprep.subr.mxu0 0.0
    %1244 = vmatpush1.msra.mxu0 0.0
    %1245 = vmatprep.subr.mxu0 0.0
    %1246 = vmatpush1.msra.mxu0 0.0
    %1247 = vmatprep.subr.mxu0 0.0
    %1248 = vmatpush1.msra.mxu0 0.0
    %1249 = vmatprep.subr.mxu0 0.0
    %1250 = vmatpush1.msra.mxu0 0.0
    %1251 = vmatprep.subr.mxu0 0.0
    %1252 = vmatpush1.msra.mxu0 0.0
    %1253 = vmatprep.subr.mxu0 0.0
    %1254 = vmatpush1.msra.mxu0 0.0
    %1255 = vmatprep.subr.mxu0 0.0
    %1256 = vmatpush1.msra.mxu0 0.0
    %1257 = vmatprep.subr.mxu0 0.0
    %1258 = vmatpush1.msra.mxu0 %v1231
    %1259 = vmatprep.subr.mxu0 0.0
    %1260 = vmatpush1.msra.mxu0 %v1230
    %1261 = vmatprep.subr.mxu0 0.0
    %1262 = vmatpush1.msra.mxu0 %v1229
    %1263 = vmatprep.subr.mxu0 0.0
    %1264 = vmatpush1.msra.mxu0 %v1228
    %1265 = vmatprep.subr.mxu0 0.0
    %1266 = vmatpush2.msra.mxu0 0.0
    %1267 = vmatprep.subr.mxu0 0.0
    %1268 = vmatpush2.msra.mxu0 0.0
    %1269 = vmatprep.subr.mxu0 0.0
    %1270 = vmatpush2.msra.mxu0 0.0
    %1271 = vmatprep.subr.mxu0 0.0
    %1272 = vmatpush2.msra.mxu0 0.0
    %1273 = vmatprep.subr.mxu0 0.0
    %1274 = vmatpush2.msra.mxu0 0.0
    %1275 = vmatprep.subr.mxu0 0.0
    %1276 = vmatpush2.msra.mxu0 0.0
    %1277 = vmatprep.subr.mxu0 0.0
    %1278 = vmatpush2.msra.mxu0 0.0
    %1279 = vmatprep.subr.mxu0 0.0
    %1280 = vmatpush2.msra.mxu0 0.0
    %1281 = vmatprep.subr.mxu0 0.0
    %1282 = vmatpush2.msra.mxu0 0.0
    %1283 = vmatprep.subr.mxu0 0.0
    %1284 = vmatpush2.msra.mxu0 0.0
    %1285 = vmatprep.subr.mxu0 0.0
    %1286 = vmatpush2.msra.mxu0 0.0
    %1287 = vmatprep.subr.mxu0 0.0
    %1288 = vmatpush2.msra.mxu0 0.0
    %1289 = vmatprep.subr.mxu0 0.0
    %1290 = vmatpush2.msra.mxu0 0.0
    %1291 = vmatprep.subr.mxu0 0.0
    %1292 = vmatpush2.msra.mxu0 0.0
    %1293 = vmatprep.subr.mxu0 0.0
    %1294 = vmatpush2.msra.mxu0 0.0
    %1295 = vmatprep.subr.mxu0 0.0
    %1296 = vmatpush2.msra.mxu0 0.0
    %1297 = vmatprep.mubr.f32.mxu0 0.0
    %1298 = vmatmul.mubr.f32.gmra.mxu0 %v227
    %v1299 = vpop.f32.mrf.mxu0
    %v1300 = vadd.f32 0.0, %v1299
    %v1301 = vpop.f32.mrf.mxu0
    %1302 = vdwg.mxu0
    %v1303 = vadd.f32 %v1232, %v1300
    %v1304 = vxor.u32 %v1303, 2147483648
    %v1305 = vmul.f32 %v1304, 1.442695
    %v1306 = vpow.pop %v1305
    %v1307 = vadd.f32 %v1306, 1.0
    %v1308 = vrcp.pop %v1307
    %v1309 = vmul.f32 1.0, %v1308
    %v1310 = vmul.f32 %v1309, 2.0
    %v1311 = vsub.f32 %v1310, 1.0
    %v1312 = vmul.f32 %v1309, 0.0
    %1314 = vrot.lane.b32.xlu0 %v1311, 64
    %v1315 = vpop.permute.xlu0 %1314
    %v1317 = vmul.f32 %v1309, %v1315
    %1319 = vrot.lane.b32.xlu0 %v1317, 32
    %v1320 = vpop.permute.xlu0 %1319
    %v1322 = vadd.f32 %v1312, %v1320
    %v1323 = vtanh.pop %v1322
    %1325 = vrot.lane.b32.xlu0 %v1323, 64
    %v1326 = vpop.permute.xlu0 %1325
    %v1328 = vmul.f32 %v1309, %v1326
    %v1329 = vld [vmem:[%s330] sm:$0xff]
    %1331 = vrot.lane.b32.xlu0 %v1328, 32
    %v1332 = vpop.permute.xlu0 %1331
    %v1333 = vsel %vm225, %v1332, 0
    %1335 = vmatprep.subr.mxu0 0.0
    %1336 = vmatpush1.msra.mxu0 0.0
    %1337 = vmatprep.subr.mxu0 0.0
    %1338 = vmatpush1.msra.mxu0 0.0
    %1339 = vmatprep.subr.mxu0 0.0
    %1340 = vmatpush1.msra.mxu0 0.0
    %1341 = vmatprep.subr.mxu0 0.0
    %1342 = vmatpush1.msra.mxu0 0.0
    %1343 = vmatprep.subr.mxu0 0.0
    %1344 = vmatpush1.msra.mxu0 0.0
    %1345 = vmatprep.subr.mxu0 0.0
    %1346 = vmatpush1.msra.mxu0 0.0
    %1347 = vmatprep.subr.mxu0 0.0
    %1348 = vmatpush1.msra.mxu0 0.0
    %1349 = vmatprep.subr.mxu0 0.0
    %1350 = vmatpush1.msra.mxu0 0.0
    %1351 = vmatprep.subr.mxu0 0.0
    %1352 = vmatpush1.msra.mxu0 0.0
    %1353 = vmatprep.subr.mxu0 0.0
    %1354 = vmatpush1.msra.mxu0 0.0
    %1355 = vmatprep.subr.mxu0 0.0
    %1356 = vmatpush1.msra.mxu0 0.0
    %1357 = vmatprep.subr.mxu0 0.0
    %1358 = vmatpush1.msra.mxu0 0.0
    %1359 = vmatprep.subr.mxu0 0.0
    %1360 = vmatpush1.msra.mxu0 %v1231
    %1361 = vmatprep.subr.mxu0 0.0
    %1362 = vmatpush1.msra.mxu0 %v1230
    %1363 = vmatprep.subr.mxu0 0.0
    %1364 = vmatpush1.msra.mxu0 %v1229
    %1365 = vmatprep.subr.mxu0 0.0
    %1366 = vmatpush1.msra.mxu0 %v1228
    %1367 = vmatprep.subr.mxu0 0.0
    %1368 = vmatpush2.msra.mxu0 0.0
    %1369 = vmatprep.subr.mxu0 0.0
    %1370 = vmatpush2.msra.mxu0 0.0
    %1371 = vmatprep.subr.mxu0 0.0
    %1372 = vmatpush2.msra.mxu0 0.0
    %1373 = vmatprep.subr.mxu0 0.0
    %1374 = vmatpush2.msra.mxu0 0.0
    %1375 = vmatprep.subr.mxu0 0.0
    %1376 = vmatpush2.msra.mxu0 0.0
    %1377 = vmatprep.subr.mxu0 0.0
    %1378 = vmatpush2.msra.mxu0 0.0
    %1379 = vmatprep.subr.mxu0 0.0
    %1380 = vmatpush2.msra.mxu0 0.0
    %1381 = vmatprep.subr.mxu0 0.0
    %1382 = vmatpush2.msra.mxu0 0.0
    %1383 = vmatprep.subr.mxu0 0.0
    %1384 = vmatpush2.msra.mxu0 0.0
    %1385 = vmatprep.subr.mxu0 0.0
    %1386 = vmatpush2.msra.mxu0 0.0
    %1387 = vmatprep.subr.mxu0 0.0
    %1388 = vmatpush2.msra.mxu0 0.0
    %1389 = vmatprep.subr.mxu0 0.0
    %1390 = vmatpush2.msra.mxu0 0.0
    %1391 = vmatprep.subr.mxu0 0.0
    %1392 = vmatpush2.msra.mxu0 0.0
    %1393 = vmatprep.subr.mxu0 0.0
    %1394 = vmatpush2.msra.mxu0 0.0
    %1395 = vmatprep.subr.mxu0 0.0
    %1396 = vmatpush2.msra.mxu0 0.0
    %1397 = vmatprep.subr.mxu0 0.0
    %1398 = vmatpush2.msra.mxu0 0.0
    %1399 = vmatprep.mubr.f32.mxu0 0.0
    %1400 = vmatmul.mubr.f32.gmra.mxu0 %v1333
    %v1401 = vpop.f32.mrf.mxu0
    %v1402 = vadd.f32 0.0, %v1401
    %v1403 = vpop.f32.mrf.mxu0
    %1404 = vdwg.mxu0
    %v1405 = vadd.f32 %v1329, %v1402
    %v1406 = vxor.u32 %v1405, 2147483648
    %v1407 = vmul.f32 %v1406, 1.442695
    %v1408 = vpow.pop %v1407
    %v1409 = vadd.f32 %v1408, 1.0
    %v1410 = vrcp.pop %v1409
    %v1411 = vmul.f32 1.0, %v1410
    %v1412 = vmul.f32 %v1411, 2.0
    %v1413 = vsub.f32 %v1412, 1.0
    %v1414 = vmul.f32 %v1411, %v1322
    %1416 = vrot.lane.b32.xlu0 %v1413, 64
    %v1417 = vpop.permute.xlu0 %1416
    %v1419 = vmul.f32 %v1411, %v1417
    %1421 = vrot.lane.b32.xlu0 %v1419, 32
    %v1422 = vpop.permute.xlu0 %1421
    %v1424 = vadd.f32 %v1414, %v1422
    %v1425 = vtanh.pop %v1424
    %1427 = vrot.lane.b32.xlu0 %v1425, 64
    %v1428 = vpop.permute.xlu0 %1427
    %v1430 = vmul.f32 %v1411, %v1428
    %v1431 = vld [vmem:[%s436] sm:$0xff]
    %1433 = vrot.lane.b32.xlu0 %v1430, 32
    %v1434 = vpop.permute.xlu0 %1433
    %v1435 = vsel %vm225, %v1434, 0
    %1437 = vmatprep.subr.mxu0 0.0
    %1438 = vmatpush1.msra.mxu0 0.0
    %1439 = vmatprep.subr.mxu0 0.0
    %1440 = vmatpush1.msra.mxu0 0.0
    %1441 = vmatprep.subr.mxu0 0.0
    %1442 = vmatpush1.msra.mxu0 0.0
    %1443 = vmatprep.subr.mxu0 0.0
    %1444 = vmatpush1.msra.mxu0 0.0
    %1445 = vmatprep.subr.mxu0 0.0
    %1446 = vmatpush1.msra.mxu0 0.0
    %1447 = vmatprep.subr.mxu0 0.0
    %1448 = vmatpush1.msra.mxu0 0.0
    %1449 = vmatprep.subr.mxu0 0.0
    %1450 = vmatpush1.msra.mxu0 0.0
    %1451 = vmatprep.subr.mxu0 0.0
    %1452 = vmatpush1.msra.mxu0 0.0
    %1453 = vmatprep.subr.mxu0 0.0
    %1454 = vmatpush1.msra.mxu0 0.0
    %1455 = vmatprep.subr.mxu0 0.0
    %1456 = vmatpush1.msra.mxu0 0.0
    %1457 = vmatprep.subr.mxu0 0.0
    %1458 = vmatpush1.msra.mxu0 0.0
    %1459 = vmatprep.subr.mxu0 0.0
    %1460 = vmatpush1.msra.mxu0 0.0
    %1461 = vmatprep.subr.mxu0 0.0
    %1462 = vmatpush1.msra.mxu0 %v1231
    %1463 = vmatprep.subr.mxu0 0.0
    %1464 = vmatpush1.msra.mxu0 %v1230
    %1465 = vmatprep.subr.mxu0 0.0
    %1466 = vmatpush1.msra.mxu0 %v1229
    %1467 = vmatprep.subr.mxu0 0.0
    %1468 = vmatpush1.msra.mxu0 %v1228
    %1469 = vmatprep.subr.mxu0 0.0
    %1470 = vmatpush2.msra.mxu0 0.0
    %1471 = vmatprep.subr.mxu0 0.0
    %1472 = vmatpush2.msra.mxu0 0.0
    %1473 = vmatprep.subr.mxu0 0.0
    %1474 = vmatpush2.msra.mxu0 0.0
    %1475 = vmatprep.subr.mxu0 0.0
    %1476 = vmatpush2.msra.mxu0 0.0
    %1477 = vmatprep.subr.mxu0 0.0
    %1478 = vmatpush2.msra.mxu0 0.0
    %1479 = vmatprep.subr.mxu0 0.0
    %1480 = vmatpush2.msra.mxu0 0.0
    %1481 = vmatprep.subr.mxu0 0.0
    %1482 = vmatpush2.msra.mxu0 0.0
    %1483 = vmatprep.subr.mxu0 0.0
    %1484 = vmatpush2.msra.mxu0 0.0
    %1485 = vmatprep.subr.mxu0 0.0
    %1486 = vmatpush2.msra.mxu0 0.0
    %1487 = vmatprep.subr.mxu0 0.0
    %1488 = vmatpush2.msra.mxu0 0.0
    %1489 = vmatprep.subr.mxu0 0.0
    %1490 = vmatpush2.msra.mxu0 0.0
    %1491 = vmatprep.subr.mxu0 0.0
    %1492 = vmatpush2.msra.mxu0 0.0
    %1493 = vmatprep.subr.mxu0 0.0
    %1494 = vmatpush2.msra.mxu0 0.0
    %1495 = vmatprep.subr.mxu0 0.0
    %1496 = vmatpush2.msra.mxu0 0.0
    %1497 = vmatprep.subr.mxu0 0.0
    %1498 = vmatpush2.msra.mxu0 0.0
    %1499 = vmatprep.subr.mxu0 0.0
    %1500 = vmatpush2.msra.mxu0 0.0
    %1501 = vmatprep.mubr.f32.mxu0 0.0
    %1502 = vmatmul.mubr.f32.gmra.mxu0 %v1435
    %v1503 = vpop.f32.mrf.mxu0
    %v1504 = vadd.f32 0.0, %v1503
    %v1505 = vpop.f32.mrf.mxu0
    %1506 = vdwg.mxu0
    %v1507 = vadd.f32 %v1431, %v1504
    %v1508 = vxor.u32 %v1507, 2147483648
    %v1509 = vmul.f32 %v1508, 1.442695
    %v1510 = vpow.pop %v1509
    %v1511 = vadd.f32 %v1510, 1.0
    %v1512 = vrcp.pop %v1511
    %v1513 = vmul.f32 1.0, %v1512
    %v1514 = vmul.f32 %v1513, 2.0
    %v1515 = vsub.f32 %v1514, 1.0
    %v1516 = vmul.f32 %v1513, %v1424
    %1518 = vrot.lane.b32.xlu0 %v1515, 64
    %v1519 = vpop.permute.xlu0 %1518
    %v1521 = vmul.f32 %v1513, %v1519
    %1523 = vrot.lane.b32.xlu0 %v1521, 32
    %v1524 = vpop.permute.xlu0 %1523
    %v1526 = vadd.f32 %v1516, %v1524
    %v1527 = vtanh.pop %v1526
    %1529 = vrot.lane.b32.xlu0 %v1527, 64
    %v1530 = vpop.permute.xlu0 %1529
    %v1532 = vmul.f32 %v1513, %v1530
    %v1533 = vld [vmem:[%s542] sm:$0xff]
    %1535 = vrot.lane.b32.xlu0 %v1532, 32
    %v1536 = vpop.permute.xlu0 %1535
    %v1537 = vsel %vm225, %v1536, 0
    %1539 = vmatprep.subr.mxu0 0.0
    %1540 = vmatpush1.msra.mxu0 0.0
    %1541 = vmatprep.subr.mxu0 0.0
    %1542 = vmatpush1.msra.mxu0 0.0
    %1543 = vmatprep.subr.mxu0 0.0
    %1544 = vmatpush1.msra.mxu0 0.0
    %1545 = vmatprep.subr.mxu0 0.0
    %1546 = vmatpush1.msra.mxu0 0.0
    %1547 = vmatprep.subr.mxu0 0.0
    %1548 = vmatpush1.msra.mxu0 0.0
    %1549 = vmatprep.subr.mxu0 0.0
    %1550 = vmatpush1.msra.mxu0 0.0
    %1551 = vmatprep.subr.mxu0 0.0
    %1552 = vmatpush1.msra.mxu0 0.0
    %1553 = vmatprep.subr.mxu0 0.0
    %1554 = vmatpush1.msra.mxu0 0.0
    %1555 = vmatprep.subr.mxu0 0.0
    %1556 = vmatpush1.msra.mxu0 0.0
    %1557 = vmatprep.subr.mxu0 0.0
    %1558 = vmatpush1.msra.mxu0 0.0
    %1559 = vmatprep.subr.mxu0 0.0
    %1560 = vmatpush1.msra.mxu0 0.0
    %1561 = vmatprep.subr.mxu0 0.0
    %1562 = vmatpush1.msra.mxu0 0.0
    %1563 = vmatprep.subr.mxu0 0.0
    %1564 = vmatpush1.msra.mxu0 %v1231
    %1565 = vmatprep.subr.mxu0 0.0
    %1566 = vmatpush1.msra.mxu0 %v1230
    %1567 = vmatprep.subr.mxu0 0.0
    %1568 = vmatpush1.msra.mxu0 %v1229
    %1569 = vmatprep.subr.mxu0 0.0
    %1570 = vmatpush1.msra.mxu0 %v1228
    %1571 = vmatprep.subr.mxu0 0.0
    %1572 = vmatpush2.msra.mxu0 0.0
    %1573 = vmatprep.subr.mxu0 0.0
    %1574 = vmatpush2.msra.mxu0 0.0
    %1575 = vmatprep.subr.mxu0 0.0
    %1576 = vmatpush2.msra.mxu0 0.0
    %1577 = vmatprep.subr.mxu0 0.0
    %1578 = vmatpush2.msra.mxu0 0.0
    %1579 = vmatprep.subr.mxu0 0.0
    %1580 = vmatpush2.msra.mxu0 0.0
    %1581 = vmatprep.subr.mxu0 0.0
    %1582 = vmatpush2.msra.mxu0 0.0
    %1583 = vmatprep.subr.mxu0 0.0
    %1584 = vmatpush2.msra.mxu0 0.0
    %1585 = vmatprep.subr.mxu0 0.0
    %1586 = vmatpush2.msra.mxu0 0.0
    %1587 = vmatprep.subr.mxu0 0.0
    %1588 = vmatpush2.msra.mxu0 0.0
    %1589 = vmatprep.subr.mxu0 0.0
    %1590 = vmatpush2.msra.mxu0 0.0
    %1591 = vmatprep.subr.mxu0 0.0
    %1592 = vmatpush2.msra.mxu0 0.0
    %1593 = vmatprep.subr.mxu0 0.0
    %1594 = vmatpush2.msra.mxu0 0.0
    %1595 = vmatprep.subr.mxu0 0.0
    %1596 = vmatpush2.msra.mxu0 0.0
    %1597 = vmatprep.subr.mxu0 0.0
    %1598 = vmatpush2.msra.mxu0 0.0
    %1599 = vmatprep.subr.mxu0 0.0
    %1600 = vmatpush2.msra.mxu0 0.0
    %1601 = vmatprep.subr.mxu0 0.0
    %1602 = vmatpush2.msra.mxu0 0.0
    %1603 = vmatprep.mubr.f32.mxu0 0.0
    %1604 = vmatmul.mubr.f32.gmra.mxu0 %v1537
    %v1605 = vpop.f32.mrf.mxu0
    %v1606 = vadd.f32 0.0, %v1605
    %v1607 = vpop.f32.mrf.mxu0
    %1608 = vdwg.mxu0
    %v1609 = vadd.f32 %v1533, %v1606
    %v1610 = vxor.u32 %v1609, 2147483648
    %v1611 = vmul.f32 %v1610, 1.442695
    %v1612 = vpow.pop %v1611
    %v1613 = vadd.f32 %v1612, 1.0
    %v1614 = vrcp.pop %v1613
    %v1615 = vmul.f32 1.0, %v1614
    %v1616 = vmul.f32 %v1615, 2.0
    %v1617 = vsub.f32 %v1616, 1.0
    %v1618 = vmul.f32 %v1615, %v1526
    %1620 = vrot.lane.b32.xlu0 %v1617, 64
    %v1621 = vpop.permute.xlu0 %1620
    %v1623 = vmul.f32 %v1615, %v1621
    %1625 = vrot.lane.b32.xlu0 %v1623, 32
    %v1626 = vpop.permute.xlu0 %1625
    %v1628 = vadd.f32 %v1618, %v1626
    %v1629 = vtanh.pop %v1628
    %1631 = vrot.lane.b32.xlu0 %v1629, 64
    %v1632 = vpop.permute.xlu0 %1631
    %v1634 = vmul.f32 %v1615, %v1632
    %v1635 = vld [vmem:[%s648] sm:$0xff]
    %1637 = vrot.lane.b32.xlu0 %v1634, 32
    %v1638 = vpop.permute.xlu0 %1637
    %v1639 = vsel %vm225, %v1638, 0
    %1641 = vmatprep.subr.mxu0 0.0
    %1642 = vmatpush1.msra.mxu0 0.0
    %1643 = vmatprep.subr.mxu0 0.0
    %1644 = vmatpush1.msra.mxu0 0.0
    %1645 = vmatprep.subr.mxu0 0.0
    %1646 = vmatpush1.msra.mxu0 0.0
    %1647 = vmatprep.subr.mxu0 0.0
    %1648 = vmatpush1.msra.mxu0 0.0
    %1649 = vmatprep.subr.mxu0 0.0
    %1650 = vmatpush1.msra.mxu0 0.0
    %1651 = vmatprep.subr.mxu0 0.0
    %1652 = vmatpush1.msra.mxu0 0.0
    %1653 = vmatprep.subr.mxu0 0.0
    %1654 = vmatpush1.msra.mxu0 0.0
    %1655 = vmatprep.subr.mxu0 0.0
    %1656 = vmatpush1.msra.mxu0 0.0
    %1657 = vmatprep.subr.mxu0 0.0
    %1658 = vmatpush1.msra.mxu0 0.0
    %1659 = vmatprep.subr.mxu0 0.0
    %1660 = vmatpush1.msra.mxu0 0.0
    %1661 = vmatprep.subr.mxu0 0.0
    %1662 = vmatpush1.msra.mxu0 0.0
    %1663 = vmatprep.subr.mxu0 0.0
    %1664 = vmatpush1.msra.mxu0 0.0
    %1665 = vmatprep.subr.mxu0 0.0
    %1666 = vmatpush1.msra.mxu0 %v1231
    %1667 = vmatprep.subr.mxu0 0.0
    %1668 = vmatpush1.msra.mxu0 %v1230
    %1669 = vmatprep.subr.mxu0 0.0
    %1670 = vmatpush1.msra.mxu0 %v1229
    %1671 = vmatprep.subr.mxu0 0.0
    %1672 = vmatpush1.msra.mxu0 %v1228
    %1673 = vmatprep.subr.mxu0 0.0
    %1674 = vmatpush2.msra.mxu0 0.0
    %1675 = vmatprep.subr.mxu0 0.0
    %1676 = vmatpush2.msra.mxu0 0.0
    %1677 = vmatprep.subr.mxu0 0.0
    %1678 = vmatpush2.msra.mxu0 0.0
    %1679 = vmatprep.subr.mxu0 0.0
    %1680 = vmatpush2.msra.mxu0 0.0
    %1681 = vmatprep.subr.mxu0 0.0
    %1682 = vmatpush2.msra.mxu0 0.0
    %1683 = vmatprep.subr.mxu0 0.0
    %1684 = vmatpush2.msra.mxu0 0.0
    %1685 = vmatprep.subr.mxu0 0.0
    %1686 = vmatpush2.msra.mxu0 0.0
    %1687 = vmatprep.subr.mxu0 0.0
    %1688 = vmatpush2.msra.mxu0 0.0
    %1689 = vmatprep.subr.mxu0 0.0
    %1690 = vmatpush2.msra.mxu0 0.0
    %1691 = vmatprep.subr.mxu0 0.0
    %1692 = vmatpush2.msra.mxu0 0.0
    %1693 = vmatprep.subr.mxu0 0.0
    %1694 = vmatpush2.msra.mxu0 0.0
    %1695 = vmatprep.subr.mxu0 0.0
    %1696 = vmatpush2.msra.mxu0 0.0
    %1697 = vmatprep.subr.mxu0 0.0
    %1698 = vmatpush2.msra.mxu0 0.0
    %1699 = vmatprep.subr.mxu0 0.0
    %1700 = vmatpush2.msra.mxu0 0.0
    %1701 = vmatprep.subr.mxu0 0.0
    %1702 = vmatpush2.msra.mxu0 0.0
    %1703 = vmatprep.subr.mxu0 0.0
    %1704 = vmatpush2.msra.mxu0 0.0
    %1705 = vmatprep.mubr.f32.mxu0 0.0
    %1706 = vmatmul.mubr.f32.gmra.mxu0 %v1639
    %v1707 = vpop.f32.mrf.mxu0
    %v1708 = vadd.f32 0.0, %v1707
    %v1709 = vpop.f32.mrf.mxu0
    %1710 = vdwg.mxu0
    %v1711 = vadd.f32 %v1635, %v1708
    %v1712 = vxor.u32 %v1711, 2147483648
    %v1713 = vmul.f32 %v1712, 1.442695
    %v1714 = vpow.pop %v1713
    %v1715 = vadd.f32 %v1714, 1.0
    %v1716 = vrcp.pop %v1715
    %v1717 = vmul.f32 1.0, %v1716
    %v1718 = vmul.f32 %v1717, 2.0
    %v1719 = vsub.f32 %v1718, 1.0
    %v1720 = vmul.f32 %v1717, %v1628
    %1722 = vrot.lane.b32.xlu0 %v1719, 64
    %v1723 = vpop.permute.xlu0 %1722
    %v1725 = vmul.f32 %v1717, %v1723
    %1727 = vrot.lane.b32.xlu0 %v1725, 32
    %v1728 = vpop.permute.xlu0 %1727
    %v1730 = vadd.f32 %v1720, %v1728
    %v1731 = vtanh.pop %v1730
    %1733 = vrot.lane.b32.xlu0 %v1731, 64
    %v1734 = vpop.permute.xlu0 %1733
    %v1736 = vmul.f32 %v1717, %v1734
    %v1737 = vld [vmem:[%s754] sm:$0xff]
    %1739 = vrot.lane.b32.xlu0 %v1736, 32
    %v1740 = vpop.permute.xlu0 %1739
    %v1741 = vsel %vm225, %v1740, 0
    %1743 = vmatprep.subr.mxu0 0.0
    %1744 = vmatpush1.msra.mxu0 0.0
    %1745 = vmatprep.subr.mxu0 0.0
    %1746 = vmatpush1.msra.mxu0 0.0
    %1747 = vmatprep.subr.mxu0 0.0
    %1748 = vmatpush1.msra.mxu0 0.0
    %1749 = vmatprep.subr.mxu0 0.0
    %1750 = vmatpush1.msra.mxu0 0.0
    %1751 = vmatprep.subr.mxu0 0.0
    %1752 = vmatpush1.msra.mxu0 0.0
    %1753 = vmatprep.subr.mxu0 0.0
    %1754 = vmatpush1.msra.mxu0 0.0
    %1755 = vmatprep.subr.mxu0 0.0
    %1756 = vmatpush1.msra.mxu0 0.0
    %1757 = vmatprep.subr.mxu0 0.0
    %1758 = vmatpush1.msra.mxu0 0.0
    %1759 = vmatprep.subr.mxu0 0.0
    %1760 = vmatpush1.msra.mxu0 0.0
    %1761 = vmatprep.subr.mxu0 0.0
    %1762 = vmatpush1.msra.mxu0 0.0
    %1763 = vmatprep.subr.mxu0 0.0
    %1764 = vmatpush1.msra.mxu0 0.0
    %1765 = vmatprep.subr.mxu0 0.0
    %1766 = vmatpush1.msra.mxu0 0.0
    %1767 = vmatprep.subr.mxu0 0.0
    %1768 = vmatpush1.msra.mxu0 %v1231
    %1769 = vmatprep.subr.mxu0 0.0
    %1770 = vmatpush1.msra.mxu0 %v1230
    %1771 = vmatprep.subr.mxu0 0.0
    %1772 = vmatpush1.msra.mxu0 %v1229
    %1773 = vmatprep.subr.mxu0 0.0
    %1774 = vmatpush1.msra.mxu0 %v1228
    %1775 = vmatprep.subr.mxu0 0.0
    %1776 = vmatpush2.msra.mxu0 0.0
    %1777 = vmatprep.subr.mxu0 0.0
    %1778 = vmatpush2.msra.mxu0 0.0
    %1779 = vmatprep.subr.mxu0 0.0
    %1780 = vmatpush2.msra.mxu0 0.0
    %1781 = vmatprep.subr.mxu0 0.0
    %1782 = vmatpush2.msra.mxu0 0.0
    %1783 = vmatprep.subr.mxu0 0.0
    %1784 = vmatpush2.msra.mxu0 0.0
    %1785 = vmatprep.subr.mxu0 0.0
    %1786 = vmatpush2.msra.mxu0 0.0
    %1787 = vmatprep.subr.mxu0 0.0
    %1788 = vmatpush2.msra.mxu0 0.0
    %1789 = vmatprep.subr.mxu0 0.0
    %1790 = vmatpush2.msra.mxu0 0.0
    %1791 = vmatprep.subr.mxu0 0.0
    %1792 = vmatpush2.msra.mxu0 0.0
    %1793 = vmatprep.subr.mxu0 0.0
    %1794 = vmatpush2.msra.mxu0 0.0
    %1795 = vmatprep.subr.mxu0 0.0
    %1796 = vmatpush2.msra.mxu0 0.0
    %1797 = vmatprep.subr.mxu0 0.0
    %1798 = vmatpush2.msra.mxu0 0.0
    %1799 = vmatprep.subr.mxu0 0.0
    %1800 = vmatpush2.msra.mxu0 0.0
    %1801 = vmatprep.subr.mxu0 0.0
    %1802 = vmatpush2.msra.mxu0 0.0
    %1803 = vmatprep.subr.mxu0 0.0
    %1804 = vmatpush2.msra.mxu0 0.0
    %1805 = vmatprep.subr.mxu0 0.0
    %1806 = vmatpush2.msra.mxu0 0.0
    %1807 = vmatprep.mubr.f32.mxu0 0.0
    %1808 = vmatmul.mubr.f32.gmra.mxu0 %v1741
    %v1809 = vpop.f32.mrf.mxu0
    %v1810 = vadd.f32 0.0, %v1809
    %v1811 = vpop.f32.mrf.mxu0
    %1812 = vdwg.mxu0
    %v1813 = vadd.f32 %v1737, %v1810
    %v1814 = vxor.u32 %v1813, 2147483648
    %v1815 = vmul.f32 %v1814, 1.442695
    %v1816 = vpow.pop %v1815
    %v1817 = vadd.f32 %v1816, 1.0
    %v1818 = vrcp.pop %v1817
    %v1819 = vmul.f32 1.0, %v1818
    %v1820 = vmul.f32 %v1819, 2.0
    %v1821 = vsub.f32 %v1820, 1.0
    %v1822 = vmul.f32 %v1819, %v1730
    %1824 = vrot.lane.b32.xlu0 %v1821, 64
    %v1825 = vpop.permute.xlu0 %1824
    %v1827 = vmul.f32 %v1819, %v1825
    %1829 = vrot.lane.b32.xlu0 %v1827, 32
    %v1830 = vpop.permute.xlu0 %1829
    %v1832 = vadd.f32 %v1822, %v1830
    %v1833 = vtanh.pop %v1832
    %1835 = vrot.lane.b32.xlu0 %v1833, 64
    %v1836 = vpop.permute.xlu0 %1835
    %v1838 = vmul.f32 %v1819, %v1836
    %v1839 = vld [vmem:[%s860] sm:$0xff]
    %1841 = vrot.lane.b32.xlu0 %v1838, 32
    %v1842 = vpop.permute.xlu0 %1841
    %v1843 = vsel %vm225, %v1842, 0
    %1845 = vmatprep.subr.mxu0 0.0
    %1846 = vmatpush1.msra.mxu0 0.0
    %1847 = vmatprep.subr.mxu0 0.0
    %1848 = vmatpush1.msra.mxu0 0.0
    %1849 = vmatprep.subr.mxu0 0.0
    %1850 = vmatpush1.msra.mxu0 0.0
    %1851 = vmatprep.subr.mxu0 0.0
    %1852 = vmatpush1.msra.mxu0 0.0
    %1853 = vmatprep.subr.mxu0 0.0
    %1854 = vmatpush1.msra.mxu0 0.0
    %1855 = vmatprep.subr.mxu0 0.0
    %1856 = vmatpush1.msra.mxu0 0.0
    %1857 = vmatprep.subr.mxu0 0.0
    %1858 = vmatpush1.msra.mxu0 0.0
    %1859 = vmatprep.subr.mxu0 0.0
    %1860 = vmatpush1.msra.mxu0 0.0
    %1861 = vmatprep.subr.mxu0 0.0
    %1862 = vmatpush1.msra.mxu0 0.0
    %1863 = vmatprep.subr.mxu0 0.0
    %1864 = vmatpush1.msra.mxu0 0.0
    %1865 = vmatprep.subr.mxu0 0.0
    %1866 = vmatpush1.msra.mxu0 0.0
    %1867 = vmatprep.subr.mxu0 0.0
    %1868 = vmatpush1.msra.mxu0 0.0
    %1869 = vmatprep.subr.mxu0 0.0
    %1870 = vmatpush1.msra.mxu0 %v1231
    %1871 = vmatprep.subr.mxu0 0.0
    %1872 = vmatpush1.msra.mxu0 %v1230
    %1873 = vmatprep.subr.mxu0 0.0
    %1874 = vmatpush1.msra.mxu0 %v1229
    %1875 = vmatprep.subr.mxu0 0.0
    %1876 = vmatpush1.msra.mxu0 %v1228
    %1877 = vmatprep.subr.mxu0 0.0
    %1878 = vmatpush2.msra.mxu0 0.0
    %1879 = vmatprep.subr.mxu0 0.0
    %1880 = vmatpush2.msra.mxu0 0.0
    %1881 = vmatprep.subr.mxu0 0.0
    %1882 = vmatpush2.msra.mxu0 0.0
    %1883 = vmatprep.subr.mxu0 0.0
    %1884 = vmatpush2.msra.mxu0 0.0
    %1885 = vmatprep.subr.mxu0 0.0
    %1886 = vmatpush2.msra.mxu0 0.0
    %1887 = vmatprep.subr.mxu0 0.0
    %1888 = vmatpush2.msra.mxu0 0.0
    %1889 = vmatprep.subr.mxu0 0.0
    %1890 = vmatpush2.msra.mxu0 0.0
    %1891 = vmatprep.subr.mxu0 0.0
    %1892 = vmatpush2.msra.mxu0 0.0
    %1893 = vmatprep.subr.mxu0 0.0
    %1894 = vmatpush2.msra.mxu0 0.0
    %1895 = vmatprep.subr.mxu0 0.0
    %1896 = vmatpush2.msra.mxu0 0.0
    %1897 = vmatprep.subr.mxu0 0.0
    %1898 = vmatpush2.msra.mxu0 0.0
    %1899 = vmatprep.subr.mxu0 0.0
    %1900 = vmatpush2.msra.mxu0 0.0
    %1901 = vmatprep.subr.mxu0 0.0
    %1902 = vmatpush2.msra.mxu0 0.0
    %1903 = vmatprep.subr.mxu0 0.0
    %1904 = vmatpush2.msra.mxu0 0.0
    %1905 = vmatprep.subr.mxu0 0.0
    %1906 = vmatpush2.msra.mxu0 0.0
    %1907 = vmatprep.subr.mxu0 0.0
    %1908 = vmatpush2.msra.mxu0 0.0
    %1909 = vmatprep.mubr.f32.mxu0 0.0
    %1910 = vmatmul.mubr.f32.gmra.mxu0 %v1843
    %v1911 = vpop.f32.mrf.mxu0
    %v1912 = vadd.f32 0.0, %v1911
    %v1913 = vpop.f32.mrf.mxu0
    %1914 = vdwg.mxu0
    %v1915 = vadd.f32 %v1839, %v1912
    %v1916 = vxor.u32 %v1915, 2147483648
    %v1917 = vmul.f32 %v1916, 1.442695
    %v1918 = vpow.pop %v1917
    %v1919 = vadd.f32 %v1918, 1.0
    %v1920 = vrcp.pop %v1919
    %v1921 = vmul.f32 1.0, %v1920
    %v1922 = vmul.f32 %v1921, 2.0
    %v1923 = vsub.f32 %v1922, 1.0
    %v1924 = vmul.f32 %v1921, %v1832
    %1926 = vrot.lane.b32.xlu0 %v1923, 64
    %v1927 = vpop.permute.xlu0 %1926
    %v1929 = vmul.f32 %v1921, %v1927
    %1931 = vrot.lane.b32.xlu0 %v1929, 32
    %v1932 = vpop.permute.xlu0 %1931
    %v1934 = vadd.f32 %v1924, %v1932
    %v1935 = vtanh.pop %v1934
    %1937 = vrot.lane.b32.xlu0 %v1935, 64
    %v1938 = vpop.permute.xlu0 %1937
    %v1940 = vmul.f32 %v1921, %v1938
    %v1941 = vld [vmem:[%s966] sm:$0xff]
    %1943 = vrot.lane.b32.xlu0 %v1940, 32
    %v1944 = vpop.permute.xlu0 %1943
    %v1945 = vsel %vm225, %v1944, 0
    %1947 = vmatprep.subr.mxu0 0.0
    %1948 = vmatpush1.msra.mxu0 0.0
    %1949 = vmatprep.subr.mxu0 0.0
    %1950 = vmatpush1.msra.mxu0 0.0
    %1951 = vmatprep.subr.mxu0 0.0
    %1952 = vmatpush1.msra.mxu0 0.0
    %1953 = vmatprep.subr.mxu0 0.0
    %1954 = vmatpush1.msra.mxu0 0.0
    %1955 = vmatprep.subr.mxu0 0.0
    %1956 = vmatpush1.msra.mxu0 0.0
    %1957 = vmatprep.subr.mxu0 0.0
    %1958 = vmatpush1.msra.mxu0 0.0
    %1959 = vmatprep.subr.mxu0 0.0
    %1960 = vmatpush1.msra.mxu0 0.0
    %1961 = vmatprep.subr.mxu0 0.0
    %1962 = vmatpush1.msra.mxu0 0.0
    %1963 = vmatprep.subr.mxu0 0.0
    %1964 = vmatpush1.msra.mxu0 0.0
    %1965 = vmatprep.subr.mxu0 0.0
    %1966 = vmatpush1.msra.mxu0 0.0
    %1967 = vmatprep.subr.mxu0 0.0
    %1968 = vmatpush1.msra.mxu0 0.0
    %1969 = vmatprep.subr.mxu0 0.0
    %1970 = vmatpush1.msra.mxu0 0.0
    %1971 = vmatprep.subr.mxu0 0.0
    %1972 = vmatpush1.msra.mxu0 %v1231
    %1973 = vmatprep.subr.mxu0 0.0
    %1974 = vmatpush1.msra.mxu0 %v1230
    %1975 = vmatprep.subr.mxu0 0.0
    %1976 = vmatpush1.msra.mxu0 %v1229
    %1977 = vmatprep.subr.mxu0 0.0
    %1978 = vmatpush1.msra.mxu0 %v1228
    %1979 = vmatprep.subr.mxu0 0.0
    %1980 = vmatpush2.msra.mxu0 0.0
    %1981 = vmatprep.subr.mxu0 0.0
    %1982 = vmatpush2.msra.mxu0 0.0
    %1983 = vmatprep.subr.mxu0 0.0
    %1984 = vmatpush2.msra.mxu0 0.0
    %1985 = vmatprep.subr.mxu0 0.0
    %1986 = vmatpush2.msra.mxu0 0.0
    %1987 = vmatprep.subr.mxu0 0.0
    %1988 = vmatpush2.msra.mxu0 0.0
    %1989 = vmatprep.subr.mxu0 0.0
    %1990 = vmatpush2.msra.mxu0 0.0
    %1991 = vmatprep.subr.mxu0 0.0
    %1992 = vmatpush2.msra.mxu0 0.0
    %1993 = vmatprep.subr.mxu0 0.0
    %1994 = vmatpush2.msra.mxu0 0.0
    %1995 = vmatprep.subr.mxu0 0.0
    %1996 = vmatpush2.msra.mxu0 0.0
    %1997 = vmatprep.subr.mxu0 0.0
    %1998 = vmatpush2.msra.mxu0 0.0
    %1999 = vmatprep.subr.mxu0 0.0
    %2000 = vmatpush2.msra.mxu0 0.0
    %2001 = vmatprep.subr.mxu0 0.0
    %2002 = vmatpush2.msra.mxu0 0.0
    %2003 = vmatprep.subr.mxu0 0.0
    %2004 = vmatpush2.msra.mxu0 0.0
    %2005 = vmatprep.subr.mxu0 0.0
    %2006 = vmatpush2.msra.mxu0 0.0
    %2007 = vmatprep.subr.mxu0 0.0
    %2008 = vmatpush2.msra.mxu0 0.0
    %2009 = vmatprep.subr.mxu0 0.0
    %2010 = vmatpush2.msra.mxu0 0.0
    %2011 = vmatprep.mubr.f32.mxu0 0.0
    %2012 = vmatmul.mubr.f32.gmra.mxu0 %v1945
    %v2013 = vpop.f32.mrf.mxu0
    %v2014 = vadd.f32 0.0, %v2013
    %v2015 = vpop.f32.mrf.mxu0
    %2016 = vdwg.mxu0
    %v2017 = vadd.f32 %v1941, %v2014
    %v2018 = vxor.u32 %v2017, 2147483648
    %v2019 = vmul.f32 %v2018, 1.442695
    %v2020 = vpow.pop %v2019
    %v2021 = vadd.f32 %v2020, 1.0
    %v2022 = vrcp.pop %v2021
    %v2023 = vmul.f32 1.0, %v2022
    %v2024 = vmul.f32 %v2023, 2.0
    %v2025 = vsub.f32 %v2024, 1.0
    %v2026 = vmul.f32 %v2023, %v1934
    %2028 = vrot.lane.b32.xlu0 %v2025, 64
    %v2029 = vpop.permute.xlu0 %2028
    %v2031 = vmul.f32 %v2023, %v2029
    %2033 = vrot.lane.b32.xlu0 %v2031, 32
    %v2034 = vpop.permute.xlu0 %2033
    %v2036 = vadd.f32 %v2026, %v2034
    %v2037 = vtanh.pop %v2036
    %2039 = vrot.lane.b32.xlu0 %v2037, 64
    %v2040 = vpop.permute.xlu0 %2039
    %v2042 = vmul.f32 %v2023, %v2040
    %v2043 = vld [vmem:[%s7] sm:$0xff]
    %v2044 = vld [vmem:[%s7 + $0x8] sm:$0xff]
    %v2045 = vld [vmem:[%s7 + $0x10] sm:$0xff]
    %v2046 = vld [vmem:[%s7 + $0x18] sm:$0xff]
    %v2047 = vld [vmem:[%s8] sm:$0x1]
    %v2049 = vlaneseq
    %v2050 = vshrl.u32 %v2049, 7
    %v2051 = vsub.s32 0, %v2050
    %v2052 = vrot.slane %v2047, %v2051
    %2055 = vrot.lane.b32.xlu0 %v2042, 32
    %v2056 = vpop.permute.xlu0 %2055
    %v2057 = vsel %vm225, %v2056, 0
    %2059 = vmatprep.subr.mxu0 0.0
    %2060 = vmatpush1.msra.mxu0 0.0
    %2061 = vmatprep.subr.mxu0 0.0
    %2062 = vmatpush1.msra.mxu0 0.0
    %2063 = vmatprep.subr.mxu0 0.0
    %2064 = vmatpush1.msra.mxu0 0.0
    %2065 = vmatprep.subr.mxu0 0.0
    %2066 = vmatpush1.msra.mxu0 0.0
    %2067 = vmatprep.subr.mxu0 0.0
    %2068 = vmatpush1.msra.mxu0 0.0
    %2069 = vmatprep.subr.mxu0 0.0
    %2070 = vmatpush1.msra.mxu0 0.0
    %2071 = vmatprep.subr.mxu0 0.0
    %2072 = vmatpush1.msra.mxu0 0.0
    %2073 = vmatprep.subr.mxu0 0.0
    %2074 = vmatpush1.msra.mxu0 0.0
    %2075 = vmatprep.subr.mxu0 0.0
    %2076 = vmatpush1.msra.mxu0 0.0
    %2077 = vmatprep.subr.mxu0 0.0
    %2078 = vmatpush1.msra.mxu0 0.0
    %2079 = vmatprep.subr.mxu0 0.0
    %2080 = vmatpush1.msra.mxu0 0.0
    %2081 = vmatprep.subr.mxu0 0.0
    %2082 = vmatpush1.msra.mxu0 0.0
    %2083 = vmatprep.subr.mxu0 0.0
    %2084 = vmatpush1.msra.mxu0 %v2046
    %2085 = vmatprep.subr.mxu0 0.0
    %2086 = vmatpush1.msra.mxu0 %v2045
    %2087 = vmatprep.subr.mxu0 0.0
    %2088 = vmatpush1.msra.mxu0 %v2044
    %2089 = vmatprep.subr.mxu0 0.0
    %2090 = vmatpush1.msra.mxu0 %v2043
    %2091 = vmatprep.subr.mxu0 0.0
    %2092 = vmatpush2.msra.mxu0 0.0
    %2093 = vmatprep.subr.mxu0 0.0
    %2094 = vmatpush2.msra.mxu0 0.0
    %2095 = vmatprep.subr.mxu0 0.0
    %2096 = vmatpush2.msra.mxu0 0.0
    %2097 = vmatprep.subr.mxu0 0.0
    %2098 = vmatpush2.msra.mxu0 0.0
    %2099 = vmatprep.subr.mxu0 0.0
    %2100 = vmatpush2.msra.mxu0 0.0
    %2101 = vmatprep.subr.mxu0 0.0
    %2102 = vmatpush2.msra.mxu0 0.0
    %2103 = vmatprep.subr.mxu0 0.0
    %2104 = vmatpush2.msra.mxu0 0.0
    %2105 = vmatprep.subr.mxu0 0.0
    %2106 = vmatpush2.msra.mxu0 0.0
    %2107 = vmatprep.subr.mxu0 0.0
    %2108 = vmatpush2.msra.mxu0 0.0
    %2109 = vmatprep.subr.mxu0 0.0
    %2110 = vmatpush2.msra.mxu0 0.0
    %2111 = vmatprep.subr.mxu0 0.0
    %2112 = vmatpush2.msra.mxu0 0.0
    %2113 = vmatprep.subr.mxu0 0.0
    %2114 = vmatpush2.msra.mxu0 0.0
    %2115 = vmatprep.subr.mxu0 0.0
    %2116 = vmatpush2.msra.mxu0 0.0
    %2117 = vmatprep.subr.mxu0 0.0
    %2118 = vmatpush2.msra.mxu0 0.0
    %2119 = vmatprep.subr.mxu0 0.0
    %2120 = vmatpush2.msra.mxu0 0.0
    %2121 = vmatprep.subr.mxu0 0.0
    %2122 = vmatpush2.msra.mxu0 0.0
    %2123 = vmatprep.mubr.f32.mxu0 0.0
    %2124 = vmatmul.mubr.f32.gmra.mxu0 %v2057
    %v2125 = vpop.f32.mrf.mxu0
    %v2126 = vadd.f32 %v2052, %v2125
    %v2127 = vpop.f32.mrf.mxu0
    %2128 = vdwg.mxu0
    %v2129 = vxor.u32 %v2126, 2147483648
    %v2130 = vmul.f32 %v2129, 1.442695
    %v2131 = vpow.pop %v2130
    %v2132 = vadd.f32 %v2131, 1.0
    %v2133 = vrcp.pop %v2132
    %v2134 = vmul.f32 1.0, %v2133
    %vm2135 = vcmask 31744
    %2136 = vst.msk [vmem:[%s9] sm:$0xff] %vm2135, %v2134
    // Predicated region
    $region46: #{tpu_custom_call.1} parent=1 // pred_check
      _
    $region47: #{tpu_custom_call.1} parent=1 // pred_check_branch
      %2138 = sbr.rel (0) target = $region49
    $region48: #{tpu_custom_call.1} parent=1 // pred_region
      _
    $region49: #{tpu_custom_call.1} parent=1 // pred_fallthru
      _
    // Predicated region
    $region50: #{tpu_custom_call.1} parent=1 // pred_check
      _
    $region51: #{tpu_custom_call.1} parent=1 // pred_check_branch
      %2140 = sbr.rel (0) target = $region53
    $region52: #{tpu_custom_call.1} parent=1 // pred_region
      _
    $region53: #{tpu_custom_call.1} parent=1 // pred_fallthru
      _
    %2141 = vsyncpa [#allocation5], 1
    %2142 = vsyncpa [#allocation7], 1

</llo_original>
